<compile_context>
chip_gen: v5e
topology: v5e:2x2
jax: 0.10.0
libtpu: 0.0.40
codegen_flags: <defaults>
</compile_context>

<pallas_src>
import jax
import jax.numpy as jnp
from jax import lax
from jax.experimental import pallas as pl
from jax.experimental.pallas import tpu as pltpu


# Tap order matches PyTorch OIHW weights flattened as (Cout, kh, kw, Cin): t = kh*3 + kw,
# with (dh, dw) = (kh-1, kw-1).
_TAPS = tuple((dh, dw) for dh in (-1, 0, 1) for dw in (-1, 0, 1))


# --------------------------------- kernel ------------------------------------

def _make_sff_kernel(H, W, C, NB):
    HW = H * W
    L = NB * HW                      # batch folded into the lane (minor) dimension
    C2 = C // 2
    pow2 = (H & (H - 1) == 0) and (W & (W - 1) == 0)

    def kernel(xl_ref, xg_ref,
               w1_ref, s1_ref, b1_ref,
               w2_ref, s2_ref, b2_ref,
               w3_ref, b3_ref,
               out_ref, patch_ref):
        # ---- fold batch into lanes: (C, NB*HW), lane-dense (HW multiple of 128) ----
        if NB == 1:
            xl = xl_ref[0]
            xg = xg_ref[0]
        else:
            xl = jnp.concatenate([xl_ref[i] for i in range(NB)], axis=1)
            xg = jnp.concatenate([xg_ref[i] for i in range(NB)], axis=1)

        # ---- border masks built in-kernel (no row/col HBM inputs) ----
        idx = lax.broadcasted_iota(jnp.int32, (1, L), 1)
        if pow2:
            pos = jnp.bitwise_and(idx, HW - 1)       # position within its own image
            col = jnp.bitwise_and(idx, W - 1)        # column within its own image
        else:
            pos = idx % HW
            col = idx % W

        def tap_mask(dh, dw):
            conds = []
            if dh == -1:
                conds.append(pos >= W)               # row >= 1
            elif dh == 1:
                conds.append(pos < (H - 1) * W)      # row <= H-2
            if dw == -1:
                conds.append(col >= 1)
            elif dw == 1:
                conds.append(col <= W - 2)
            if not conds:
                return None
            m = conds[0]
            for c in conds[1:]:
                m = jnp.logical_and(m, c)
            return m

        masks = {t: tap_mask(*t) for t in _TAPS}

        def shifted(x, dh, dw):
            """result[:, p] = x[:, p + dh*W + dw] inside the image, 0 outside.

            The masks zero every tap that would cross an image border, so rolling over
            the batched lane axis never leaks data between images."""
            d = dh * W + dw
            xs = x if d == 0 else pltpu.roll(x, shift=(-d) % L, axis=1)
            m = masks[(dh, dw)]
            return xs if m is None else jnp.where(m, xs, 0.0)

        # ---- conv1 (2C -> C): scratch im2col, one aligned 2C-row store per tap, 1 dot ----
        xcat = jnp.concatenate([xl, xg], axis=0)     # (2C, L); matches torch.cat(dim=1)
        for t, (dh, dw) in enumerate(_TAPS):
            patch_ref[pl.ds(t * 2 * C, 2 * C), :] = shifted(xcat, dh, dw)
        h1 = jnp.dot(w1_ref[...], patch_ref[...], preferred_element_type=jnp.float32)
        h1 = jnp.maximum(h1 * s1_ref[...] + b1_ref[...], 0.0)       # folded BN + ReLU

        # ---- conv2 (C -> C/2): register-level patch (8-row aligned pieces), 1 dot ----
        p2 = jnp.concatenate([shifted(h1, dh, dw) for (dh, dw) in _TAPS], axis=0)
        h2 = jnp.dot(w2_ref[...], p2, preferred_element_type=jnp.float32)
        h2 = jnp.maximum(h2 * s2_ref[...] + b2_ref[...], 0.0)       # folded BN + ReLU

        # ---- conv3 (C/2 -> 2): per-tap accumulated tiny dots (avoids 4-row misaligned
        #      patch writes); MXU is idle, so these are free ----
        h3 = None
        for t, (dh, dw) in enumerate(_TAPS):
            contrib = jnp.dot(w3_ref[t], shifted(h2, dh, dw),
                              preferred_element_type=jnp.float32)
            h3 = contrib if h3 is None else h3 + contrib
        h3 = h3 + b3_ref[...]

        # Exact sigmoid (approx reciprocal loosens numerics vs the 1e-3 tolerance).
        attn = 1.0 / (1.0 + jnp.exp(-h3))            # (2, L)

        # selective fusion: out = x_local * attn[0] + x_global * attn[1]
        out = xl * attn[0:1, :] + xg * attn[1:2, :]  # (C, L)
        if NB == 1:
            out_ref[0] = out.astype(out_ref.dtype)
        else:
            for i in range(NB):
                out_ref[i] = out[:, i * HW:(i + 1) * HW].astype(out_ref.dtype)

    return kernel


# ----------------------------- parameter folding -----------------------------

def _fold_params(p, eps):
    """Fold conv bias + eval-mode BN into (scale, bias); flatten OIHW conv weights to
    the tap-major / channel-minor layout used by the in-kernel im2col patches."""
    def flat_w(w):
        cout = w.shape[0]
        return jnp.transpose(w, (0, 2, 3, 1)).reshape(cout, -1)      # (Cout, 9*Cin)

    s1 = p["bn1_gamma"] / jnp.sqrt(p["bn1_var"] + eps)
    b1 = (p["conv1_b"] - p["bn1_mean"]) * s1 + p["bn1_beta"]
    s2 = p["bn2_gamma"] / jnp.sqrt(p["bn2_var"] + eps)
    b2 = (p["conv2_b"] - p["bn2_mean"]) * s2 + p["bn2_beta"]

    w3 = p["conv3_w"]                                                # (2, C2, 3, 3)
    w3_taps = jnp.transpose(w3, (2, 3, 0, 1)).reshape(9, w3.shape[0], w3.shape[1])

    return dict(
        w1=flat_w(p["conv1_w"]), s1=s1[:, None], b1=b1[:, None],
        w2=flat_w(p["conv2_w"]), s2=s2[:, None], b2=b2[:, None],
        w3=w3_taps, b3=p["conv3_b"][:, None],
    )


# -------------------------------- wrapper ------------------------------------

def selective_feature_fusion(x_local, x_global, params, eps=1e-5, batch_splits=1):
    """x_local, x_global: (N, C, H, W) float32 (NCHW, like the PyTorch module).

    batch_splits=1 -> whole batch in one grid step (best on single-TC v5e/v6e).
    batch_splits=2 -> two 'parallel' grid steps so both v7x TensorCores get work.
    """
    N, C, H, W = x_local.shape
    C2 = C // 2
    HW = H * W
    assert N % batch_splits == 0, "batch must divide evenly across grid steps"
    NB = N // batch_splits

    # Free reshapes only (contiguous NCHW -> (N, C, H*W)); no transposes.
    xl = x_local.reshape(N, C, HW).astype(jnp.float32)
    xg = x_global.reshape(N, C, HW).astype(jnp.float32)
    kp = _fold_params(params, eps)

    grid_spec = pltpu.PrefetchScalarGridSpec(
        num_scalar_prefetch=0,
        grid=(batch_splits,),                                 # NB images per grid step
        in_specs=[
            pl.BlockSpec((NB, C, HW), lambda n: (n, 0, 0)),   # x_local
            pl.BlockSpec((NB, C, HW), lambda n: (n, 0, 0)),   # x_global
            pl.BlockSpec((C, 9 * 2 * C), lambda n: (0, 0)),   # w1 (Cout, 9*2C)
            pl.BlockSpec((C, 1), lambda n: (0, 0)),           # s1
            pl.BlockSpec((C, 1), lambda n: (0, 0)),           # b1
            pl.BlockSpec((C2, 9 * C), lambda n: (0, 0)),      # w2
            pl.BlockSpec((C2, 1), lambda n: (0, 0)),          # s2
            pl.BlockSpec((C2, 1), lambda n: (0, 0)),          # b2
            pl.BlockSpec((9, 2, C2), lambda n: (0, 0, 0)),    # w3 (tap-major)
            pl.BlockSpec((2, 1), lambda n: (0, 0)),           # b3
        ],
        out_specs=pl.BlockSpec((NB, C, HW), lambda n: (n, 0, 0)),
        scratch_shapes=[pltpu.VMEM((9 * 2 * C, NB * HW), jnp.float32)],  # conv1 im2col
    )

    out = pl.pallas_call(
        _make_sff_kernel(H, W, C, NB),
        out_shape=jax.ShapeDtypeStruct((N, C, HW), jnp.float32),
        grid_spec=grid_spec,
        compiler_params=pltpu.CompilerParams(
            dimension_semantics=("parallel",)),               # batch blocks independent
    )(xl, xg,
      kp["w1"], kp["s1"], kp["b1"],
      kp["w2"], kp["s2"], kp["b2"],
      kp["w3"], kp["b3"])

    return out.reshape(N, C, H, W)


# ---------------------------- parameter creation ------------------------------

def make_params(key, in_channel=8):
    """Deterministic synthetic parameters in PyTorch layout (OIHW conv weights)."""
    C, C2 = in_channel, in_channel // 2
    ks = jax.random.split(key, 14)

    def nrm(k, shape, scale=0.1):
        return scale * jax.random.normal(k, shape, jnp.float32)

    return dict(
        conv1_w=nrm(ks[0], (C, 2 * C, 3, 3)), conv1_b=nrm(ks[1], (C,)),
        bn1_gamma=1.0 + nrm(ks[2], (C,)), bn1_beta=nrm(ks[3], (C,)),
        bn1_mean=nrm(ks[4], (C,)),
        bn1_var=0.5 + jax.random.uniform(ks[5], (C,), jnp.float32),
        conv2_w=nrm(ks[6], (C2, C, 3, 3)), conv2_b=nrm(ks[7], (C2,)),
        bn2_gamma=1.0 + nrm(ks[8], (C2,)), bn2_beta=nrm(ks[9], (C2,)),
        bn2_mean=nrm(ks[10], (C2,)),
        bn2_var=0.5 + jax.random.uniform(ks[11], (C2,), jnp.float32),
        conv3_w=nrm(ks[12], (2, C2, 3, 3)), conv3_b=nrm(ks[13], (2,)),
    )


# ------------------------------ pure-JAX reference ----------------------------

def reference_forward(x_local, x_global, params, eps=1e-5):
    p = params

    def conv(x, w, b):
        y = lax.conv_general_dilated(
            x, w, window_strides=(1, 1), padding=((1, 1), (1, 1)),
            dimension_numbers=("NCHW", "OIHW", "NCHW"),
            precision=lax.Precision.HIGHEST)
        return y + b.reshape(1, -1, 1, 1)

    def bn(x, g, beta, mean, var):
        rs = lambda v: v.reshape(1, -1, 1, 1)
        return (x - rs(mean)) / jnp.sqrt(rs(var) + eps) * rs(g) + rs(beta)

    x = jnp.concatenate([x_local, x_global], axis=1)
    h1 = jnp.maximum(bn(conv(x, p["conv1_w"], p["conv1_b"]),
                        p["bn1_gamma"], p["bn1_beta"], p["bn1_mean"], p["bn1_var"]), 0.0)
    h2 = jnp.maximum(bn(conv(h1, p["conv2_w"], p["conv2_b"]),
                        p["bn2_gamma"], p["bn2_beta"], p["bn2_mean"], p["bn2_var"]), 0.0)
    h3 = conv(h2, p["conv3_w"], p["conv3_b"])
    attn = 1.0 / (1.0 + jnp.exp(-h3))
    return x_local * attn[:, 0:1] + x_global * attn[:, 1:2]


# ----------------------------------- main -------------------------------------

if __name__ == "__main__":
    key = jax.random.PRNGKey(0)
    k1, k2, k3 = jax.random.split(key, 3)

    in_channel = 8
    N, H, W = 2, 16, 16
    x_local = jax.random.normal(k1, (N, in_channel, H, W), jnp.float32)
    x_global = jax.random.normal(k2, (N, in_channel, H, W), jnp.float32)
    params = make_params(k3, in_channel)

    ref = reference_forward(x_local, x_global, params)

    # Default: grid collapsed to a single step (batch folded into lanes).
    out = selective_feature_fusion(x_local, x_global, params, batch_splits=1)
    out = jax.block_until_ready(out)
    assert out.shape == (N, in_channel, H, W)
    max_err = float(jnp.max(jnp.abs(out - ref)))
    assert max_err < 1e-3, f"max abs error too large (batch_splits=1): {max_err}"

    # v7x-style split: 2 'parallel' grid steps (exercises the per-image path too).
    out2 = selective_feature_fusion(x_local, x_global, params, batch_splits=2)
    out2 = jax.block_until_ready(out2)
    max_err2 = float(jnp.max(jnp.abs(out2 - ref)))
    assert max_err2 < 1e-3, f"max abs error too large (batch_splits=2): {max_err2}"

    print("KERNEL_OK")
</pallas_src>

<mosaic_0001>
module attributes {stable_mosaic.version = 11 : i64} {
  func.func @kernel(%arg0: i32, %arg1: memref<2x8x256xf32, #tpu.memory_space<vmem>>, %arg2: memref<2x8x256xf32, #tpu.memory_space<vmem>>, %arg3: memref<8x144xf32, #tpu.memory_space<vmem>>, %arg4: memref<8x1xf32, #tpu.memory_space<vmem>>, %arg5: memref<8x1xf32, #tpu.memory_space<vmem>>, %arg6: memref<4x72xf32, #tpu.memory_space<vmem>>, %arg7: memref<4x1xf32, #tpu.memory_space<vmem>>, %arg8: memref<4x1xf32, #tpu.memory_space<vmem>>, %arg9: memref<9x2x4xf32, #tpu.memory_space<vmem>>, %arg10: memref<2x1xf32, #tpu.memory_space<vmem>>, %arg11: memref<2x8x256xf32, #tpu.memory_space<vmem>>, %arg12: memref<144x512xf32, #tpu.memory_space<vmem>>) attributes {dimension_semantics = [#tpu.dimension_semantics<parallel>], iteration_bounds = array<i64: 1>, scalar_prefetch = 0 : i64, scratch_operands = 1 : i64, tpu.core_type = #tpu.core_type<tc>, window_params = [{transform_indices = @transform_0, window_bounds = array<i64: 2, 8, 256>}, {transform_indices = @transform_1, window_bounds = array<i64: 2, 8, 256>}, {pipeline_mode = #tpu.pipeline_mode<synchronous>, transform_indices = @transform_2, window_bounds = array<i64: 8, 144>}, {pipeline_mode = #tpu.pipeline_mode<synchronous>, transform_indices = @transform_3, window_bounds = array<i64: 8, 1>}, {pipeline_mode = #tpu.pipeline_mode<synchronous>, transform_indices = @transform_4, window_bounds = array<i64: 8, 1>}, {pipeline_mode = #tpu.pipeline_mode<synchronous>, transform_indices = @transform_5, window_bounds = array<i64: 4, 72>}, {pipeline_mode = #tpu.pipeline_mode<synchronous>, transform_indices = @transform_6, window_bounds = array<i64: 4, 1>}, {pipeline_mode = #tpu.pipeline_mode<synchronous>, transform_indices = @transform_7, window_bounds = array<i64: 4, 1>}, {pipeline_mode = #tpu.pipeline_mode<synchronous>, transform_indices = @transform_8, window_bounds = array<i64: 9, 2, 4>}, {pipeline_mode = #tpu.pipeline_mode<synchronous>, transform_indices = @transform_9, window_bounds = array<i64: 2, 1>}, {transform_indices = @transform_10, window_bounds = array<i64: 2, 8, 256>}]} {
    %c0 = arith.constant 0 : index
    %c0_0 = arith.constant 0 : index
    %c0_1 = arith.constant 0 : index
    %0 = vector.load %arg1[%c0, %c0_0, %c0_1] : memref<2x8x256xf32, #tpu.memory_space<vmem>>, vector<1x8x256xf32>
    %1 = vector.shape_cast %0 : vector<1x8x256xf32> to vector<8x256xf32>
    %c1 = arith.constant 1 : index
    %c0_2 = arith.constant 0 : index
    %c0_3 = arith.constant 0 : index
    %2 = vector.load %arg1[%c1, %c0_2, %c0_3] : memref<2x8x256xf32, #tpu.memory_space<vmem>>, vector<1x8x256xf32>
    %3 = vector.shape_cast %2 : vector<1x8x256xf32> to vector<8x256xf32>
    %4 = tpu.concatenate %1, %3 in 1 : vector<8x256xf32>, vector<8x256xf32> -> vector<8x512xf32>
    %c0_4 = arith.constant 0 : index
    %c0_5 = arith.constant 0 : index
    %c0_6 = arith.constant 0 : index
    %5 = vector.load %arg2[%c0_4, %c0_5, %c0_6] : memref<2x8x256xf32, #tpu.memory_space<vmem>>, vector<1x8x256xf32>
    %6 = vector.shape_cast %5 : vector<1x8x256xf32> to vector<8x256xf32>
    %c1_7 = arith.constant 1 : index
    %c0_8 = arith.constant 0 : index
    %c0_9 = arith.constant 0 : index
    %7 = vector.load %arg2[%c1_7, %c0_8, %c0_9] : memref<2x8x256xf32, #tpu.memory_space<vmem>>, vector<1x8x256xf32>
    %8 = vector.shape_cast %7 : vector<1x8x256xf32> to vector<8x256xf32>
    %9 = tpu.concatenate %6, %8 in 1 : vector<8x256xf32>, vector<8x256xf32> -> vector<8x512xf32>
    %10 = tpu.iota {dimensions = array<i32: 1>} : vector<1x512xi32>
    %c255_i32 = arith.constant 255 : i32
    %11 = vector.broadcast %c255_i32 : i32 to vector<1x512xi32>
    %12 = arith.andi %10, %11 : vector<1x512xi32>
    %c15_i32 = arith.constant 15 : i32
    %13 = vector.broadcast %c15_i32 : i32 to vector<1x512xi32>
    %14 = arith.andi %10, %13 : vector<1x512xi32>
    %c16_i32 = arith.constant 16 : i32
    %15 = vector.broadcast %c16_i32 : i32 to vector<1x512xi32>
    %16 = arith.cmpi sge, %12, %15 : vector<1x512xi32>
    %c1_i32 = arith.constant 1 : i32
    %17 = vector.broadcast %c1_i32 : i32 to vector<1x512xi32>
    %18 = arith.cmpi sge, %14, %17 : vector<1x512xi32>
    %19 = arith.andi %16, %18 : vector<1x512xi1>
    %c16_i32_10 = arith.constant 16 : i32
    %20 = vector.broadcast %c16_i32_10 : i32 to vector<1x512xi32>
    %21 = arith.cmpi sge, %12, %20 : vector<1x512xi32>
    %c16_i32_11 = arith.constant 16 : i32
    %22 = vector.broadcast %c16_i32_11 : i32 to vector<1x512xi32>
    %23 = arith.cmpi sge, %12, %22 : vector<1x512xi32>
    %c14_i32 = arith.constant 14 : i32
    %24 = vector.broadcast %c14_i32 : i32 to vector<1x512xi32>
    %25 = arith.cmpi sle, %14, %24 : vector<1x512xi32>
    %26 = arith.andi %23, %25 : vector<1x512xi1>
    %c1_i32_12 = arith.constant 1 : i32
    %27 = vector.broadcast %c1_i32_12 : i32 to vector<1x512xi32>
    %28 = arith.cmpi sge, %14, %27 : vector<1x512xi32>
    %c14_i32_13 = arith.constant 14 : i32
    %29 = vector.broadcast %c14_i32_13 : i32 to vector<1x512xi32>
    %30 = arith.cmpi sle, %14, %29 : vector<1x512xi32>
    %c240_i32 = arith.constant 240 : i32
    %31 = vector.broadcast %c240_i32 : i32 to vector<1x512xi32>
    %32 = arith.cmpi slt, %12, %31 : vector<1x512xi32>
    %c1_i32_14 = arith.constant 1 : i32
    %33 = vector.broadcast %c1_i32_14 : i32 to vector<1x512xi32>
    %34 = arith.cmpi sge, %14, %33 : vector<1x512xi32>
    %35 = arith.andi %32, %34 : vector<1x512xi1>
    %c240_i32_15 = arith.constant 240 : i32
    %36 = vector.broadcast %c240_i32_15 : i32 to vector<1x512xi32>
    %37 = arith.cmpi slt, %12, %36 : vector<1x512xi32>
    %c240_i32_16 = arith.constant 240 : i32
    %38 = vector.broadcast %c240_i32_16 : i32 to vector<1x512xi32>
    %39 = arith.cmpi slt, %12, %38 : vector<1x512xi32>
    %c14_i32_17 = arith.constant 14 : i32
    %40 = vector.broadcast %c14_i32_17 : i32 to vector<1x512xi32>
    %41 = arith.cmpi sle, %14, %40 : vector<1x512xi32>
    %42 = arith.andi %39, %41 : vector<1x512xi1>
    %43 = tpu.concatenate %4, %9 in 0 : vector<8x512xf32>, vector<8x512xf32> -> vector<16x512xf32>
    %c17_i32 = arith.constant 17 : i32
    %44 = tpu.dynamic_rotate %43 by %c17_i32 dim 1 : vector<16x512xf32>, i32 -> vector<16x512xf32>
    %cst = arith.constant 0.000000e+00 : f32
    %45 = vector.shape_cast %19 : vector<1x512xi1> to vector<1x512xi1>
    %46 = vector.broadcast %45 : vector<1x512xi1> to vector<16x512xi1>
    %47 = vector.broadcast %cst : f32 to vector<16x512xf32>
    %48 = arith.select %46, %44, %47 : vector<16x512xi1>, vector<16x512xf32>
    %c0_18 = arith.constant 0 : index
    %c0_19 = arith.constant 0 : index
    %49 = vector.load %arg12[%c0_18, %c0_19] : memref<144x512xf32, #tpu.memory_space<vmem>>, vector<16x512xf32>
    tpu.vector_store %arg12[%c0_18, %c0_19], %48 {strides = array<i32>} : memref<144x512xf32, #tpu.memory_space<vmem>>, vector<16x512xf32>,
    %c16_i32_20 = arith.constant 16 : i32
    %50 = tpu.dynamic_rotate %43 by %c16_i32_20 dim 1 : vector<16x512xf32>, i32 -> vector<16x512xf32>
    %cst_21 = arith.constant 0.000000e+00 : f32
    %51 = vector.shape_cast %21 : vector<1x512xi1> to vector<1x512xi1>
    %52 = vector.broadcast %51 : vector<1x512xi1> to vector<16x512xi1>
    %53 = vector.broadcast %cst_21 : f32 to vector<16x512xf32>
    %54 = arith.select %52, %50, %53 : vector<16x512xi1>, vector<16x512xf32>
    %c16 = arith.constant 16 : index
    %c0_22 = arith.constant 0 : index
    %55 = vector.load %arg12[%c16, %c0_22] : memref<144x512xf32, #tpu.memory_space<vmem>>, vector<16x512xf32>
    tpu.vector_store %arg12[%c16, %c0_22], %54 {strides = array<i32>} : memref<144x512xf32, #tpu.memory_space<vmem>>, vector<16x512xf32>,
    %c15_i32_23 = arith.constant 15 : i32
    %56 = tpu.dynamic_rotate %43 by %c15_i32_23 dim 1 : vector<16x512xf32>, i32 -> vector<16x512xf32>
    %cst_24 = arith.constant 0.000000e+00 : f32
    %57 = vector.shape_cast %26 : vector<1x512xi1> to vector<1x512xi1>
    %58 = vector.broadcast %57 : vector<1x512xi1> to vector<16x512xi1>
    %59 = vector.broadcast %cst_24 : f32 to vector<16x512xf32>
    %60 = arith.select %58, %56, %59 : vector<16x512xi1>, vector<16x512xf32>
    %c32 = arith.constant 32 : index
    %c0_25 = arith.constant 0 : index
    %61 = vector.load %arg12[%c32, %c0_25] : memref<144x512xf32, #tpu.memory_space<vmem>>, vector<16x512xf32>
    tpu.vector_store %arg12[%c32, %c0_25], %60 {strides = array<i32>} : memref<144x512xf32, #tpu.memory_space<vmem>>, vector<16x512xf32>,
    %c1_i32_26 = arith.constant 1 : i32
    %62 = tpu.dynamic_rotate %43 by %c1_i32_26 dim 1 : vector<16x512xf32>, i32 -> vector<16x512xf32>
    %cst_27 = arith.constant 0.000000e+00 : f32
    %63 = vector.shape_cast %28 : vector<1x512xi1> to vector<1x512xi1>
    %64 = vector.broadcast %63 : vector<1x512xi1> to vector<16x512xi1>
    %65 = vector.broadcast %cst_27 : f32 to vector<16x512xf32>
    %66 = arith.select %64, %62, %65 : vector<16x512xi1>, vector<16x512xf32>
    %c48 = arith.constant 48 : index
    %c0_28 = arith.constant 0 : index
    %67 = vector.load %arg12[%c48, %c0_28] : memref<144x512xf32, #tpu.memory_space<vmem>>, vector<16x512xf32>
    tpu.vector_store %arg12[%c48, %c0_28], %66 {strides = array<i32>} : memref<144x512xf32, #tpu.memory_space<vmem>>, vector<16x512xf32>,
    %c64 = arith.constant 64 : index
    %c0_29 = arith.constant 0 : index
    %68 = vector.load %arg12[%c64, %c0_29] : memref<144x512xf32, #tpu.memory_space<vmem>>, vector<16x512xf32>
    tpu.vector_store %arg12[%c64, %c0_29], %43 {strides = array<i32>} : memref<144x512xf32, #tpu.memory_space<vmem>>, vector<16x512xf32>,
    %c511_i32 = arith.constant 511 : i32
    %69 = tpu.dynamic_rotate %43 by %c511_i32 dim 1 : vector<16x512xf32>, i32 -> vector<16x512xf32>
    %cst_30 = arith.constant 0.000000e+00 : f32
    %70 = vector.shape_cast %30 : vector<1x512xi1> to vector<1x512xi1>
    %71 = vector.broadcast %70 : vector<1x512xi1> to vector<16x512xi1>
    %72 = vector.broadcast %cst_30 : f32 to vector<16x512xf32>
    %73 = arith.select %71, %69, %72 : vector<16x512xi1>, vector<16x512xf32>
    %c80 = arith.constant 80 : index
    %c0_31 = arith.constant 0 : index
    %74 = vector.load %arg12[%c80, %c0_31] : memref<144x512xf32, #tpu.memory_space<vmem>>, vector<16x512xf32>
    tpu.vector_store %arg12[%c80, %c0_31], %73 {strides = array<i32>} : memref<144x512xf32, #tpu.memory_space<vmem>>, vector<16x512xf32>,
    %c497_i32 = arith.constant 497 : i32
    %75 = tpu.dynamic_rotate %43 by %c497_i32 dim 1 : vector<16x512xf32>, i32 -> vector<16x512xf32>
    %cst_32 = arith.constant 0.000000e+00 : f32
    %76 = vector.shape_cast %35 : vector<1x512xi1> to vector<1x512xi1>
    %77 = vector.broadcast %76 : vector<1x512xi1> to vector<16x512xi1>
    %78 = vector.broadcast %cst_32 : f32 to vector<16x512xf32>
    %79 = arith.select %77, %75, %78 : vector<16x512xi1>, vector<16x512xf32>
    %c96 = arith.constant 96 : index
    %c0_33 = arith.constant 0 : index
    %80 = vector.load %arg12[%c96, %c0_33] : memref<144x512xf32, #tpu.memory_space<vmem>>, vector<16x512xf32>
    tpu.vector_store %arg12[%c96, %c0_33], %79 {strides = array<i32>} : memref<144x512xf32, #tpu.memory_space<vmem>>, vector<16x512xf32>,
    %c496_i32 = arith.constant 496 : i32
    %81 = tpu.dynamic_rotate %43 by %c496_i32 dim 1 : vector<16x512xf32>, i32 -> vector<16x512xf32>
    %cst_34 = arith.constant 0.000000e+00 : f32
    %82 = vector.shape_cast %37 : vector<1x512xi1> to vector<1x512xi1>
    %83 = vector.broadcast %82 : vector<1x512xi1> to vector<16x512xi1>
    %84 = vector.broadcast %cst_34 : f32 to vector<16x512xf32>
    %85 = arith.select %83, %81, %84 : vector<16x512xi1>, vector<16x512xf32>
    %c112 = arith.constant 112 : index
    %c0_35 = arith.constant 0 : index
    %86 = vector.load %arg12[%c112, %c0_35] : memref<144x512xf32, #tpu.memory_space<vmem>>, vector<16x512xf32>
    tpu.vector_store %arg12[%c112, %c0_35], %85 {strides = array<i32>} : memref<144x512xf32, #tpu.memory_space<vmem>>, vector<16x512xf32>,
    %c495_i32 = arith.constant 495 : i32
    %87 = tpu.dynamic_rotate %43 by %c495_i32 dim 1 : vector<16x512xf32>, i32 -> vector<16x512xf32>
    %cst_36 = arith.constant 0.000000e+00 : f32
    %88 = vector.shape_cast %42 : vector<1x512xi1> to vector<1x512xi1>
    %89 = vector.broadcast %88 : vector<1x512xi1> to vector<16x512xi1>
    %90 = vector.broadcast %cst_36 : f32 to vector<16x512xf32>
    %91 = arith.select %89, %87, %90 : vector<16x512xi1>, vector<16x512xf32>
    %c128 = arith.constant 128 : index
    %c0_37 = arith.constant 0 : index
    %92 = vector.load %arg12[%c128, %c0_37] : memref<144x512xf32, #tpu.memory_space<vmem>>, vector<16x512xf32>
    tpu.vector_store %arg12[%c128, %c0_37], %91 {strides = array<i32>} : memref<144x512xf32, #tpu.memory_space<vmem>>, vector<16x512xf32>,
    %c0_38 = arith.constant 0 : index
    %c0_39 = arith.constant 0 : index
    %93 = vector.load %arg3[%c0_38, %c0_39] : memref<8x144xf32, #tpu.memory_space<vmem>>, vector<8x144xf32>
    %c0_40 = arith.constant 0 : index
    %c0_41 = arith.constant 0 : index
    %94 = vector.load %arg12[%c0_40, %c0_41] : memref<144x512xf32, #tpu.memory_space<vmem>>, vector<144x512xf32>
    %cst_42 = arith.constant dense<0.000000e+00> : vector<8x512xf32>
    %95 = tpu.matmul %93, %94, %cst_42 {dimension_numbers = #tpu.dot_dimension_numbers<[1], [0], [0], [1], [0, 0, 1, 1], [], []>} : vector<8x144xf32>, vector<144x512xf32>, vector<8x512xf32> -> vector<8x512xf32>
    %c0_43 = arith.constant 0 : index
    %c0_44 = arith.constant 0 : index
    %96 = vector.load %arg4[%c0_43, %c0_44] : memref<8x1xf32, #tpu.memory_space<vmem>>, vector<8x1xf32>
    %97 = vector.broadcast %96 : vector<8x1xf32> to vector<8x512xf32>
    %98 = arith.mulf %95, %97 : vector<8x512xf32>
    %c0_45 = arith.constant 0 : index
    %c0_46 = arith.constant 0 : index
    %99 = vector.load %arg5[%c0_45, %c0_46] : memref<8x1xf32, #tpu.memory_space<vmem>>, vector<8x1xf32>
    %100 = vector.broadcast %99 : vector<8x1xf32> to vector<8x512xf32>
    %101 = arith.addf %98, %100 : vector<8x512xf32>
    %cst_47 = arith.constant 0.000000e+00 : f32
    %102 = vector.broadcast %cst_47 : f32 to vector<8x512xf32>
    %103 = arith.maximumf %101, %102 : vector<8x512xf32>
    %c17_i32_48 = arith.constant 17 : i32
    %104 = tpu.dynamic_rotate %103 by %c17_i32_48 dim 1 : vector<8x512xf32>, i32 -> vector<8x512xf32>
    %cst_49 = arith.constant 0.000000e+00 : f32
    %105 = vector.shape_cast %19 : vector<1x512xi1> to vector<1x512xi1>
    %106 = vector.broadcast %105 : vector<1x512xi1> to vector<8x512xi1>
    %107 = vector.broadcast %cst_49 : f32 to vector<8x512xf32>
    %108 = arith.select %106, %104, %107 : vector<8x512xi1>, vector<8x512xf32>
    %c16_i32_50 = arith.constant 16 : i32
    %109 = tpu.dynamic_rotate %103 by %c16_i32_50 dim 1 : vector<8x512xf32>, i32 -> vector<8x512xf32>
    %cst_51 = arith.constant 0.000000e+00 : f32
    %110 = vector.shape_cast %21 : vector<1x512xi1> to vector<1x512xi1>
    %111 = vector.broadcast %110 : vector<1x512xi1> to vector<8x512xi1>
    %112 = vector.broadcast %cst_51 : f32 to vector<8x512xf32>
    %113 = arith.select %111, %109, %112 : vector<8x512xi1>, vector<8x512xf32>
    %c15_i32_52 = arith.constant 15 : i32
    %114 = tpu.dynamic_rotate %103 by %c15_i32_52 dim 1 : vector<8x512xf32>, i32 -> vector<8x512xf32>
    %cst_53 = arith.constant 0.000000e+00 : f32
    %115 = vector.shape_cast %26 : vector<1x512xi1> to vector<1x512xi1>
    %116 = vector.broadcast %115 : vector<1x512xi1> to vector<8x512xi1>
    %117 = vector.broadcast %cst_53 : f32 to vector<8x512xf32>
    %118 = arith.select %116, %114, %117 : vector<8x512xi1>, vector<8x512xf32>
    %c1_i32_54 = arith.constant 1 : i32
    %119 = tpu.dynamic_rotate %103 by %c1_i32_54 dim 1 : vector<8x512xf32>, i32 -> vector<8x512xf32>
    %cst_55 = arith.constant 0.000000e+00 : f32
    %120 = vector.shape_cast %28 : vector<1x512xi1> to vector<1x512xi1>
    %121 = vector.broadcast %120 : vector<1x512xi1> to vector<8x512xi1>
    %122 = vector.broadcast %cst_55 : f32 to vector<8x512xf32>
    %123 = arith.select %121, %119, %122 : vector<8x512xi1>, vector<8x512xf32>
    %c511_i32_56 = arith.constant 511 : i32
    %124 = tpu.dynamic_rotate %103 by %c511_i32_56 dim 1 : vector<8x512xf32>, i32 -> vector<8x512xf32>
    %cst_57 = arith.constant 0.000000e+00 : f32
    %125 = vector.shape_cast %30 : vector<1x512xi1> to vector<1x512xi1>
    %126 = vector.broadcast %125 : vector<1x512xi1> to vector<8x512xi1>
    %127 = vector.broadcast %cst_57 : f32 to vector<8x512xf32>
    %128 = arith.select %126, %124, %127 : vector<8x512xi1>, vector<8x512xf32>
    %c497_i32_58 = arith.constant 497 : i32
    %129 = tpu.dynamic_rotate %103 by %c497_i32_58 dim 1 : vector<8x512xf32>, i32 -> vector<8x512xf32>
    %cst_59 = arith.constant 0.000000e+00 : f32
    %130 = vector.shape_cast %35 : vector<1x512xi1> to vector<1x512xi1>
    %131 = vector.broadcast %130 : vector<1x512xi1> to vector<8x512xi1>
    %132 = vector.broadcast %cst_59 : f32 to vector<8x512xf32>
    %133 = arith.select %131, %129, %132 : vector<8x512xi1>, vector<8x512xf32>
    %c496_i32_60 = arith.constant 496 : i32
    %134 = tpu.dynamic_rotate %103 by %c496_i32_60 dim 1 : vector<8x512xf32>, i32 -> vector<8x512xf32>
    %cst_61 = arith.constant 0.000000e+00 : f32
    %135 = vector.shape_cast %37 : vector<1x512xi1> to vector<1x512xi1>
    %136 = vector.broadcast %135 : vector<1x512xi1> to vector<8x512xi1>
    %137 = vector.broadcast %cst_61 : f32 to vector<8x512xf32>
    %138 = arith.select %136, %134, %137 : vector<8x512xi1>, vector<8x512xf32>
    %c495_i32_62 = arith.constant 495 : i32
    %139 = tpu.dynamic_rotate %103 by %c495_i32_62 dim 1 : vector<8x512xf32>, i32 -> vector<8x512xf32>
    %cst_63 = arith.constant 0.000000e+00 : f32
    %140 = vector.shape_cast %42 : vector<1x512xi1> to vector<1x512xi1>
    %141 = vector.broadcast %140 : vector<1x512xi1> to vector<8x512xi1>
    %142 = vector.broadcast %cst_63 : f32 to vector<8x512xf32>
    %143 = arith.select %141, %139, %142 : vector<8x512xi1>, vector<8x512xf32>
    %144 = tpu.concatenate %108, %113, %118, %123, %103, %128, %133, %138, %143 in 0 : vector<8x512xf32>, vector<8x512xf32>, vector<8x512xf32>, vector<8x512xf32>, vector<8x512xf32>, vector<8x512xf32>, vector<8x512xf32>, vector<8x512xf32>, vector<8x512xf32> -> vector<72x512xf32>
    %c0_64 = arith.constant 0 : index
    %c0_65 = arith.constant 0 : index
    %145 = vector.load %arg6[%c0_64, %c0_65] : memref<4x72xf32, #tpu.memory_space<vmem>>, vector<4x72xf32>
    %cst_66 = arith.constant dense<0.000000e+00> : vector<4x512xf32>
    %146 = tpu.matmul %145, %144, %cst_66 {dimension_numbers = #tpu.dot_dimension_numbers<[1], [0], [0], [1], [0, 0, 1, 1], [], []>} : vector<4x72xf32>, vector<72x512xf32>, vector<4x512xf32> -> vector<4x512xf32>
    %c0_67 = arith.constant 0 : index
    %c0_68 = arith.constant 0 : index
    %147 = vector.load %arg7[%c0_67, %c0_68] : memref<4x1xf32, #tpu.memory_space<vmem>>, vector<4x1xf32>
    %148 = vector.broadcast %147 : vector<4x1xf32> to vector<4x512xf32>
    %149 = arith.mulf %146, %148 : vector<4x512xf32>
    %c0_69 = arith.constant 0 : index
    %c0_70 = arith.constant 0 : index
    %150 = vector.load %arg8[%c0_69, %c0_70] : memref<4x1xf32, #tpu.memory_space<vmem>>, vector<4x1xf32>
    %151 = vector.broadcast %150 : vector<4x1xf32> to vector<4x512xf32>
    %152 = arith.addf %149, %151 : vector<4x512xf32>
    %cst_71 = arith.constant 0.000000e+00 : f32
    %153 = vector.broadcast %cst_71 : f32 to vector<4x512xf32>
    %154 = arith.maximumf %152, %153 : vector<4x512xf32>
    %c0_72 = arith.constant 0 : index
    %c0_73 = arith.constant 0 : index
    %c0_74 = arith.constant 0 : index
    %155 = vector.load %arg9[%c0_72, %c0_73, %c0_74] : memref<9x2x4xf32, #tpu.memory_space<vmem>>, vector<1x2x4xf32>
    %156 = vector.shape_cast %155 : vector<1x2x4xf32> to vector<2x4xf32>
    %c17_i32_75 = arith.constant 17 : i32
    %157 = tpu.dynamic_rotate %154 by %c17_i32_75 dim 1 : vector<4x512xf32>, i32 -> vector<4x512xf32>
    %cst_76 = arith.constant 0.000000e+00 : f32
    %158 = vector.shape_cast %19 : vector<1x512xi1> to vector<1x512xi1>
    %159 = vector.broadcast %158 : vector<1x512xi1> to vector<4x512xi1>
    %160 = vector.broadcast %cst_76 : f32 to vector<4x512xf32>
    %161 = arith.select %159, %157, %160 : vector<4x512xi1>, vector<4x512xf32>
    %cst_77 = arith.constant dense<0.000000e+00> : vector<2x512xf32>
    %162 = tpu.matmul %156, %161, %cst_77 {dimension_numbers = #tpu.dot_dimension_numbers<[1], [0], [0], [1], [0, 0, 1, 1], [], []>} : vector<2x4xf32>, vector<4x512xf32>, vector<2x512xf32> -> vector<2x512xf32>
    %c1_78 = arith.constant 1 : index
    %c0_79 = arith.constant 0 : index
    %c0_80 = arith.constant 0 : index
    %163 = vector.load %arg9[%c1_78, %c0_79, %c0_80] : memref<9x2x4xf32, #tpu.memory_space<vmem>>, vector<1x2x4xf32>
    %164 = vector.shape_cast %163 : vector<1x2x4xf32> to vector<2x4xf32>
    %c16_i32_81 = arith.constant 16 : i32
    %165 = tpu.dynamic_rotate %154 by %c16_i32_81 dim 1 : vector<4x512xf32>, i32 -> vector<4x512xf32>
    %cst_82 = arith.constant 0.000000e+00 : f32
    %166 = vector.shape_cast %21 : vector<1x512xi1> to vector<1x512xi1>
    %167 = vector.broadcast %166 : vector<1x512xi1> to vector<4x512xi1>
    %168 = vector.broadcast %cst_82 : f32 to vector<4x512xf32>
    %169 = arith.select %167, %165, %168 : vector<4x512xi1>, vector<4x512xf32>
    %cst_83 = arith.constant dense<0.000000e+00> : vector<2x512xf32>
    %170 = tpu.matmul %164, %169, %cst_83 {dimension_numbers = #tpu.dot_dimension_numbers<[1], [0], [0], [1], [0, 0, 1, 1], [], []>} : vector<2x4xf32>, vector<4x512xf32>, vector<2x512xf32> -> vector<2x512xf32>
    %171 = arith.addf %162, %170 : vector<2x512xf32>
    %c2 = arith.constant 2 : index
    %c0_84 = arith.constant 0 : index
    %c0_85 = arith.constant 0 : index
    %172 = vector.load %arg9[%c2, %c0_84, %c0_85] : memref<9x2x4xf32, #tpu.memory_space<vmem>>, vector<1x2x4xf32>
    %173 = vector.shape_cast %172 : vector<1x2x4xf32> to vector<2x4xf32>
    %c15_i32_86 = arith.constant 15 : i32
    %174 = tpu.dynamic_rotate %154 by %c15_i32_86 dim 1 : vector<4x512xf32>, i32 -> vector<4x512xf32>
    %cst_87 = arith.constant 0.000000e+00 : f32
    %175 = vector.shape_cast %26 : vector<1x512xi1> to vector<1x512xi1>
    %176 = vector.broadcast %175 : vector<1x512xi1> to vector<4x512xi1>
    %177 = vector.broadcast %cst_87 : f32 to vector<4x512xf32>
    %178 = arith.select %176, %174, %177 : vector<4x512xi1>, vector<4x512xf32>
    %cst_88 = arith.constant dense<0.000000e+00> : vector<2x512xf32>
    %179 = tpu.matmul %173, %178, %cst_88 {dimension_numbers = #tpu.dot_dimension_numbers<[1], [0], [0], [1], [0, 0, 1, 1], [], []>} : vector<2x4xf32>, vector<4x512xf32>, vector<2x512xf32> -> vector<2x512xf32>
    %180 = arith.addf %171, %179 : vector<2x512xf32>
    %c3 = arith.constant 3 : index
    %c0_89 = arith.constant 0 : index
    %c0_90 = arith.constant 0 : index
    %181 = vector.load %arg9[%c3, %c0_89, %c0_90] : memref<9x2x4xf32, #tpu.memory_space<vmem>>, vector<1x2x4xf32>
    %182 = vector.shape_cast %181 : vector<1x2x4xf32> to vector<2x4xf32>
    %c1_i32_91 = arith.constant 1 : i32
    %183 = tpu.dynamic_rotate %154 by %c1_i32_91 dim 1 : vector<4x512xf32>, i32 -> vector<4x512xf32>
    %cst_92 = arith.constant 0.000000e+00 : f32
    %184 = vector.shape_cast %28 : vector<1x512xi1> to vector<1x512xi1>
    %185 = vector.broadcast %184 : vector<1x512xi1> to vector<4x512xi1>
    %186 = vector.broadcast %cst_92 : f32 to vector<4x512xf32>
    %187 = arith.select %185, %183, %186 : vector<4x512xi1>, vector<4x512xf32>
    %cst_93 = arith.constant dense<0.000000e+00> : vector<2x512xf32>
    %188 = tpu.matmul %182, %187, %cst_93 {dimension_numbers = #tpu.dot_dimension_numbers<[1], [0], [0], [1], [0, 0, 1, 1], [], []>} : vector<2x4xf32>, vector<4x512xf32>, vector<2x512xf32> -> vector<2x512xf32>
    %189 = arith.addf %180, %188 : vector<2x512xf32>
    %c4 = arith.constant 4 : index
    %c0_94 = arith.constant 0 : index
    %c0_95 = arith.constant 0 : index
    %190 = vector.load %arg9[%c4, %c0_94, %c0_95] : memref<9x2x4xf32, #tpu.memory_space<vmem>>, vector<1x2x4xf32>
    %191 = vector.shape_cast %190 : vector<1x2x4xf32> to vector<2x4xf32>
    %cst_96 = arith.constant dense<0.000000e+00> : vector<2x512xf32>
    %192 = tpu.matmul %191, %154, %cst_96 {dimension_numbers = #tpu.dot_dimension_numbers<[1], [0], [0], [1], [0, 0, 1, 1], [], []>} : vector<2x4xf32>, vector<4x512xf32>, vector<2x512xf32> -> vector<2x512xf32>
    %193 = arith.addf %189, %192 : vector<2x512xf32>
    %c5 = arith.constant 5 : index
    %c0_97 = arith.constant 0 : index
    %c0_98 = arith.constant 0 : index
    %194 = vector.load %arg9[%c5, %c0_97, %c0_98] : memref<9x2x4xf32, #tpu.memory_space<vmem>>, vector<1x2x4xf32>
    %195 = vector.shape_cast %194 : vector<1x2x4xf32> to vector<2x4xf32>
    %c511_i32_99 = arith.constant 511 : i32
    %196 = tpu.dynamic_rotate %154 by %c511_i32_99 dim 1 : vector<4x512xf32>, i32 -> vector<4x512xf32>
    %cst_100 = arith.constant 0.000000e+00 : f32
    %197 = vector.shape_cast %30 : vector<1x512xi1> to vector<1x512xi1>
    %198 = vector.broadcast %197 : vector<1x512xi1> to vector<4x512xi1>
    %199 = vector.broadcast %cst_100 : f32 to vector<4x512xf32>
    %200 = arith.select %198, %196, %199 : vector<4x512xi1>, vector<4x512xf32>
    %cst_101 = arith.constant dense<0.000000e+00> : vector<2x512xf32>
    %201 = tpu.matmul %195, %200, %cst_101 {dimension_numbers = #tpu.dot_dimension_numbers<[1], [0], [0], [1], [0, 0, 1, 1], [], []>} : vector<2x4xf32>, vector<4x512xf32>, vector<2x512xf32> -> vector<2x512xf32>
    %202 = arith.addf %193, %201 : vector<2x512xf32>
    %c6 = arith.constant 6 : index
    %c0_102 = arith.constant 0 : index
    %c0_103 = arith.constant 0 : index
    %203 = vector.load %arg9[%c6, %c0_102, %c0_103] : memref<9x2x4xf32, #tpu.memory_space<vmem>>, vector<1x2x4xf32>
    %204 = vector.shape_cast %203 : vector<1x2x4xf32> to vector<2x4xf32>
    %c497_i32_104 = arith.constant 497 : i32
    %205 = tpu.dynamic_rotate %154 by %c497_i32_104 dim 1 : vector<4x512xf32>, i32 -> vector<4x512xf32>
    %cst_105 = arith.constant 0.000000e+00 : f32
    %206 = vector.shape_cast %35 : vector<1x512xi1> to vector<1x512xi1>
    %207 = vector.broadcast %206 : vector<1x512xi1> to vector<4x512xi1>
    %208 = vector.broadcast %cst_105 : f32 to vector<4x512xf32>
    %209 = arith.select %207, %205, %208 : vector<4x512xi1>, vector<4x512xf32>
    %cst_106 = arith.constant dense<0.000000e+00> : vector<2x512xf32>
    %210 = tpu.matmul %204, %209, %cst_106 {dimension_numbers = #tpu.dot_dimension_numbers<[1], [0], [0], [1], [0, 0, 1, 1], [], []>} : vector<2x4xf32>, vector<4x512xf32>, vector<2x512xf32> -> vector<2x512xf32>
    %211 = arith.addf %202, %210 : vector<2x512xf32>
    %c7 = arith.constant 7 : index
    %c0_107 = arith.constant 0 : index
    %c0_108 = arith.constant 0 : index
    %212 = vector.load %arg9[%c7, %c0_107, %c0_108] : memref<9x2x4xf32, #tpu.memory_space<vmem>>, vector<1x2x4xf32>
    %213 = vector.shape_cast %212 : vector<1x2x4xf32> to vector<2x4xf32>
    %c496_i32_109 = arith.constant 496 : i32
    %214 = tpu.dynamic_rotate %154 by %c496_i32_109 dim 1 : vector<4x512xf32>, i32 -> vector<4x512xf32>
    %cst_110 = arith.constant 0.000000e+00 : f32
    %215 = vector.shape_cast %37 : vector<1x512xi1> to vector<1x512xi1>
    %216 = vector.broadcast %215 : vector<1x512xi1> to vector<4x512xi1>
    %217 = vector.broadcast %cst_110 : f32 to vector<4x512xf32>
    %218 = arith.select %216, %214, %217 : vector<4x512xi1>, vector<4x512xf32>
    %cst_111 = arith.constant dense<0.000000e+00> : vector<2x512xf32>
    %219 = tpu.matmul %213, %218, %cst_111 {dimension_numbers = #tpu.dot_dimension_numbers<[1], [0], [0], [1], [0, 0, 1, 1], [], []>} : vector<2x4xf32>, vector<4x512xf32>, vector<2x512xf32> -> vector<2x512xf32>
    %220 = arith.addf %211, %219 : vector<2x512xf32>
    %c8 = arith.constant 8 : index
    %c0_112 = arith.constant 0 : index
    %c0_113 = arith.constant 0 : index
    %221 = vector.load %arg9[%c8, %c0_112, %c0_113] : memref<9x2x4xf32, #tpu.memory_space<vmem>>, vector<1x2x4xf32>
    %222 = vector.shape_cast %221 : vector<1x2x4xf32> to vector<2x4xf32>
    %c495_i32_114 = arith.constant 495 : i32
    %223 = tpu.dynamic_rotate %154 by %c495_i32_114 dim 1 : vector<4x512xf32>, i32 -> vector<4x512xf32>
    %cst_115 = arith.constant 0.000000e+00 : f32
    %224 = vector.shape_cast %42 : vector<1x512xi1> to vector<1x512xi1>
    %225 = vector.broadcast %224 : vector<1x512xi1> to vector<4x512xi1>
    %226 = vector.broadcast %cst_115 : f32 to vector<4x512xf32>
    %227 = arith.select %225, %223, %226 : vector<4x512xi1>, vector<4x512xf32>
    %cst_116 = arith.constant dense<0.000000e+00> : vector<2x512xf32>
    %228 = tpu.matmul %222, %227, %cst_116 {dimension_numbers = #tpu.dot_dimension_numbers<[1], [0], [0], [1], [0, 0, 1, 1], [], []>} : vector<2x4xf32>, vector<4x512xf32>, vector<2x512xf32> -> vector<2x512xf32>
    %229 = arith.addf %220, %228 : vector<2x512xf32>
    %c0_117 = arith.constant 0 : index
    %c0_118 = arith.constant 0 : index
    %230 = vector.load %arg10[%c0_117, %c0_118] : memref<2x1xf32, #tpu.memory_space<vmem>>, vector<2x1xf32>
    %231 = vector.broadcast %230 : vector<2x1xf32> to vector<2x512xf32>
    %232 = arith.addf %229, %231 : vector<2x512xf32>
    %cst_119 = arith.constant 0.000000e+00 : f32
    %233 = vector.broadcast %cst_119 : f32 to vector<2x512xf32>
    %234 = arith.subf %233, %232 : vector<2x512xf32>
    %235 = math.exp %234 : vector<2x512xf32>
    %cst_120 = arith.constant 1.000000e+00 : f32
    %236 = vector.broadcast %cst_120 : f32 to vector<2x512xf32>
    %237 = arith.addf %236, %235 : vector<2x512xf32>
    %cst_121 = arith.constant 1.000000e+00 : f32
    %238 = vector.broadcast %cst_121 : f32 to vector<2x512xf32>
    %239 = arith.divf %238, %237 : vector<2x512xf32>
    %240 = vector.extract_strided_slice %239 {offsets = [0, 0], sizes = [1, 512], strides = [1, 1]} : vector<2x512xf32> to vector<1x512xf32>
    %241 = vector.broadcast %240 : vector<1x512xf32> to vector<8x512xf32>
    %242 = arith.mulf %4, %241 : vector<8x512xf32>
    %243 = vector.extract_strided_slice %239 {offsets = [1, 0], sizes = [1, 512], strides = [1, 1]} : vector<2x512xf32> to vector<1x512xf32>
    %244 = vector.broadcast %243 : vector<1x512xf32> to vector<8x512xf32>
    %245 = arith.mulf %9, %244 : vector<8x512xf32>
    %246 = arith.addf %242, %245 : vector<8x512xf32>
    %247 = vector.extract_strided_slice %246 {offsets = [0, 0], sizes = [8, 256], strides = [1, 1]} : vector<8x512xf32> to vector<8x256xf32>
    %c0_122 = arith.constant 0 : index
    %c0_123 = arith.constant 0 : index
    %c0_124 = arith.constant 0 : index
    %248 = vector.load %arg11[%c0_122, %c0_123, %c0_124] : memref<2x8x256xf32, #tpu.memory_space<vmem>>, vector<1x8x256xf32>
    %249 = vector.shape_cast %248 : vector<1x8x256xf32> to vector<8x256xf32>
    %250 = vector.shape_cast %247 : vector<8x256xf32> to vector<1x8x256xf32>
    tpu.vector_store %arg11[%c0_122, %c0_123, %c0_124], %250 {strides = array<i32>} : memref<2x8x256xf32, #tpu.memory_space<vmem>>, vector<1x8x256xf32>,
    %251 = vector.extract_strided_slice %246 {offsets = [0, 256], sizes = [8, 256], strides = [1, 1]} : vector<8x512xf32> to vector<8x256xf32>
    %c1_125 = arith.constant 1 : index
    %c0_126 = arith.constant 0 : index
    %c0_127 = arith.constant 0 : index
    %252 = vector.load %arg11[%c1_125, %c0_126, %c0_127] : memref<2x8x256xf32, #tpu.memory_space<vmem>>, vector<1x8x256xf32>
    %253 = vector.shape_cast %252 : vector<1x8x256xf32> to vector<8x256xf32>
    %254 = vector.shape_cast %251 : vector<8x256xf32> to vector<1x8x256xf32>
    tpu.vector_store %arg11[%c1_125, %c0_126, %c0_127], %254 {strides = array<i32>} : memref<2x8x256xf32, #tpu.memory_space<vmem>>, vector<1x8x256xf32>,
    return
  }
  func.func @transform_0(%arg0: i32) -> (i32, i32, i32) {
    %c0_i32 = arith.constant 0 : i32
    %c0_i32_0 = arith.constant 0 : i32
    %c0_i32_1 = arith.constant 0 : i32
    return %arg0, %c0_i32, %c0_i32_0 : i32, i32, i32
  }
  func.func @transform_1(%arg0: i32) -> (i32, i32, i32) {
    %c0_i32 = arith.constant 0 : i32
    %c0_i32_0 = arith.constant 0 : i32
    %c0_i32_1 = arith.constant 0 : i32
    return %arg0, %c0_i32, %c0_i32_0 : i32, i32, i32
  }
  func.func @transform_2(%arg0: i32) -> (i32, i32) {
    %c0_i32 = arith.constant 0 : i32
    %c0_i32_0 = arith.constant 0 : i32
    %c0_i32_1 = arith.constant 0 : i32
    return %c0_i32, %c0_i32_0 : i32, i32
  }
  func.func @transform_3(%arg0: i32) -> (i32, i32) {
    %c0_i32 = arith.constant 0 : i32
    %c0_i32_0 = arith.constant 0 : i32
    %c0_i32_1 = arith.constant 0 : i32
    return %c0_i32, %c0_i32_0 : i32, i32
  }
  func.func @transform_4(%arg0: i32) -> (i32, i32) {
    %c0_i32 = arith.constant 0 : i32
    %c0_i32_0 = arith.constant 0 : i32
    %c0_i32_1 = arith.constant 0 : i32
    return %c0_i32, %c0_i32_0 : i32, i32
  }
  func.func @transform_5(%arg0: i32) -> (i32, i32) {
    %c0_i32 = arith.constant 0 : i32
    %c0_i32_0 = arith.constant 0 : i32
    %c0_i32_1 = arith.constant 0 : i32
    return %c0_i32, %c0_i32_0 : i32, i32
  }
  func.func @transform_6(%arg0: i32) -> (i32, i32) {
    %c0_i32 = arith.constant 0 : i32
    %c0_i32_0 = arith.constant 0 : i32
    %c0_i32_1 = arith.constant 0 : i32
    return %c0_i32, %c0_i32_0 : i32, i32
  }
  func.func @transform_7(%arg0: i32) -> (i32, i32) {
    %c0_i32 = arith.constant 0 : i32
    %c0_i32_0 = arith.constant 0 : i32
    %c0_i32_1 = arith.constant 0 : i32
    return %c0_i32, %c0_i32_0 : i32, i32
  }
  func.func @transform_8(%arg0: i32) -> (i32, i32, i32) {
    %c0_i32 = arith.constant 0 : i32
    %c0_i32_0 = arith.constant 0 : i32
    %c0_i32_1 = arith.constant 0 : i32
    %c0_i32_2 = arith.constant 0 : i32
    return %c0_i32, %c0_i32_0, %c0_i32_1 : i32, i32, i32
  }
  func.func @transform_9(%arg0: i32) -> (i32, i32) {
    %c0_i32 = arith.constant 0 : i32
    %c0_i32_0 = arith.constant 0 : i32
    %c0_i32_1 = arith.constant 0 : i32
    return %c0_i32, %c0_i32_0 : i32, i32
  }
  func.func @transform_10(%arg0: i32) -> (i32, i32, i32) {
    %c0_i32 = arith.constant 0 : i32
    %c0_i32_0 = arith.constant 0 : i32
    %c0_i32_1 = arith.constant 0 : i32
    return %arg0, %c0_i32, %c0_i32_0 : i32, i32, i32
  }
}

</mosaic_0001>

<llo_original>
// kernel: tpu_custom_call.1
$region0: #{tpu_custom_call.1}
  #allocation0 [shape = 'u32[]', space=smem, size = 0x4, offset = 0x4, fixed_abs, tag = 'smem constant byte address 0x4 - core index']
  #allocation1 [shape = 'u32[72,128]{1,0:T(1,128)}', space=vmem, size = 0x9000, scoped, tag = 'internal scratch']
  #allocation2 [shape = 'f32[144,512]{1,0:T(8,128)}', space=vmem, size = 0x48000, scoped, tag = 'scratch operand']
  %s0 = inlined_call_operand.vmem [shape: f32[2,8,256], index: 0, kind: input, shape index: {}]
  %s1 = inlined_call_operand.hbm [shape: f32[2,8,256], index: 1, kind: input, shape index: {}]
  %s2 = inlined_call_operand.hbm [shape: f32[8,144], index: 2, kind: input, shape index: {}]
  %s3 = inlined_call_operand.vmem [shape: f32[8,1], index: 3, kind: input, shape index: {}]
  %s4 = inlined_call_operand.vmem [shape: f32[8,1], index: 4, kind: input, shape index: {}]
  %s5 = inlined_call_operand.vmem [shape: f32[4,72], index: 5, kind: input, shape index: {}]
  %s6 = inlined_call_operand.vmem [shape: f32[4,1], index: 6, kind: input, shape index: {}]
  %s7 = inlined_call_operand.vmem [shape: f32[4,1], index: 7, kind: input, shape index: {}]
  %s8 = inlined_call_operand.vmem [shape: f32[9,2,4], index: 8, kind: input, shape index: {}]
  %s9 = inlined_call_operand.vmem [shape: f32[2,1], index: 9, kind: input, shape index: {}]
  %s10 = inlined_call_operand.hbm [shape: f32[2,8,256], index: 10, kind: output, shape index: {}]
  %s11 = sld [smem:[#allocation0]]
  $region58: #{tpu_custom_call.1} parent=0
    _
  %s13 = ssub.s32 1, %s11
  %s14 = scalar_select 0, %s13, %s11
  $region1: #{tpu_custom_call.1} parent=0
    #allocation3 [shape = 'u8[16384]{0}', space=vmem, size = 0x4000, scoped, tag = 'input window, operand 1, single buffered']
    #allocation4 [shape = 's32[1]{0}', space=sflag, size = 0x4, scoped, tag = 'scoped memory for tpu_custom_call.1']
    #allocation5 [shape = 's32[1]{0}', space=sflag, size = 0x4, scoped, tag = 'scoped memory for tpu_custom_call.1']
    #allocation6 [shape = 'u8[8192]{0}', space=vmem, size = 0x2000, scoped, tag = 'input window, operand 2, single buffered']
    #allocation7 [shape = 's32[1]{0}', space=sflag, size = 0x4, scoped, tag = 'scoped memory for tpu_custom_call.1']
    #allocation8 [shape = 'u8[16384]{0}', space=vmem, size = 0x4000, scoped, tag = 'output window, operand 0, single buffered']
    %15 = vsyncpa [#allocation4], 0
    %16 = vsyncpa [#allocation7], 0
    %17 = vsyncpa [#allocation5], 0
    // Predicated region
    $region2: #{tpu_custom_call.1} parent=1 // pred_check
      _
    $region3: #{tpu_custom_call.1} parent=1 // pred_check_branch
      %19 = sbr.rel (0) target = $region5
    $region4: #{tpu_custom_call.1} parent=1 // pred_region
      _
    $region5: #{tpu_custom_call.1} parent=1 // pred_fallthru
      _
    // Predicated region
    $region6: #{tpu_custom_call.1} parent=1 // pred_check
      _
    $region7: #{tpu_custom_call.1} parent=1 // pred_check_branch
      %21 = sbr.rel (0) target = $region9
    $region8: #{tpu_custom_call.1} parent=1 // pred_region
      %23 = vsyncadd [#allocation4], 0
      %s24 = sshll.u32 %s1, 4
      %s25 = int_to_ptr.hbm [resolvable:$true] %s24
      %s26 = sshll.u32 [#allocation3], 4
      %s27 = int_to_ptr.vmem [resolvable:$true] %s26
      %32 = dma.hbm_to_vmem [thread:$0]  %s25, 512, %s27, [#allocation4], 256, 256, 16
    $region9: #{tpu_custom_call.1} parent=1 // pred_fallthru
      _
    // Predicated region
    $region10: #{tpu_custom_call.1} parent=1 // pred_check
      _
    $region11: #{tpu_custom_call.1} parent=1 // pred_check_branch
      %34 = sbr.rel (0) target = $region13
    $region12: #{tpu_custom_call.1} parent=1 // pred_region
      %36 = vsyncadd [#allocation7], 0
      %s38 = sshll.u32 %s2, 4
      %s39 = int_to_ptr.hbm [resolvable:$true] %s38
      %s40 = sshll.u32 [#allocation6], 4
      %s41 = int_to_ptr.vmem [resolvable:$true] %s40
      %43 = dma.hbm_to_vmem [thread:$0]  %s39, 256, %s41, [#allocation7]
    $region13: #{tpu_custom_call.1} parent=1 // pred_fallthru
      _
    // Predicated region
    $region14: #{tpu_custom_call.1} parent=1 // pred_check
      _
    $region15: #{tpu_custom_call.1} parent=1 // pred_check_branch
      %45 = sbr.rel (0) target = $region17
    $region16: #{tpu_custom_call.1} parent=1 // pred_region
      _
    $region17: #{tpu_custom_call.1} parent=1 // pred_fallthru
      _
    // Predicated region
    $region18: #{tpu_custom_call.1} parent=1 // pred_check
      _
    $region19: #{tpu_custom_call.1} parent=1 // pred_check_branch
      %47 = sbr.rel (0) target = $region21
    $region20: #{tpu_custom_call.1} parent=1 // pred_region
      _
    $region21: #{tpu_custom_call.1} parent=1 // pred_fallthru
      _
    // Predicated region
    $region22: #{tpu_custom_call.1} parent=1 // pred_check
      _
    $region23: #{tpu_custom_call.1} parent=1 // pred_check_branch
      %49 = sbr.rel (0) target = $region25
    $region24: #{tpu_custom_call.1} parent=1 // pred_region
      _
    $region25: #{tpu_custom_call.1} parent=1 // pred_fallthru
      _
    // Predicated region
    $region26: #{tpu_custom_call.1} parent=1 // pred_check
      _
    $region27: #{tpu_custom_call.1} parent=1 // pred_check_branch
      %51 = sbr.rel (0) target = $region29
    $region28: #{tpu_custom_call.1} parent=1 // pred_region
      _
    $region29: #{tpu_custom_call.1} parent=1 // pred_fallthru
      _
    // Predicated region
    $region30: #{tpu_custom_call.1} parent=1 // pred_check
      _
    $region31: #{tpu_custom_call.1} parent=1 // pred_check_branch
      %53 = sbr.rel (0) target = $region33
    $region32: #{tpu_custom_call.1} parent=1 // pred_region
      _
    $region33: #{tpu_custom_call.1} parent=1 // pred_fallthru
      _
    // Predicated region
    $region34: #{tpu_custom_call.1} parent=1 // pred_check
      _
    $region35: #{tpu_custom_call.1} parent=1 // pred_check_branch
      %55 = sbr.rel (0) target = $region37
    $region36: #{tpu_custom_call.1} parent=1 // pred_region
      _
    $region37: #{tpu_custom_call.1} parent=1 // pred_fallthru
      _
    // Predicated region
    $region38: #{tpu_custom_call.1} parent=1 // pred_check
      _
    $region39: #{tpu_custom_call.1} parent=1 // pred_check_branch
      %57 = sbr.rel (0) target = $region41
    $region40: #{tpu_custom_call.1} parent=1 // pred_region
      _
    $region41: #{tpu_custom_call.1} parent=1 // pred_fallthru
      _
    // Predicated region
    $region42: #{tpu_custom_call.1} parent=1 // pred_check
      _
    $region43: #{tpu_custom_call.1} parent=1 // pred_check_branch
      %59 = sbr.rel (0) target = $region45
    $region44: #{tpu_custom_call.1} parent=1 // pred_region
      %61 = dma.done [#allocation4], 512
    $region45: #{tpu_custom_call.1} parent=1 // pred_fallthru
      _
    // Predicated region
    $region46: #{tpu_custom_call.1} parent=1 // pred_check
      _
    $region47: #{tpu_custom_call.1} parent=1 // pred_check_branch
      %63 = sbr.rel (0) target = $region49
    $region48: #{tpu_custom_call.1} parent=1 // pred_region
      %65 = dma.done [#allocation7], 256
    $region49: #{tpu_custom_call.1} parent=1 // pred_fallthru
      _
    %v66 = vld [vmem:[%s0] sm:$0xff]
    %v67 = vld [vmem:[%s0 + $0x8] sm:$0xff]
    %s68 = scalar_lea.vmem %s0, 16
    %v69 = vld [vmem:[%s68] sm:$0xff]
    %v70 = vld [vmem:[%s68 + $0x8] sm:$0xff]
    %v71 = vld [vmem:[#allocation3] sm:$0xff]
    %v72 = vld [vmem:[#allocation3 + $0x8] sm:$0xff]
    %s73 = scalar_lea.vmem [#allocation3], 16
    %v74 = vld [vmem:[%s73] sm:$0xff]
    %v75 = vld [vmem:[%s73 + $0x8] sm:$0xff]
    %v76 = vlaneseq
    %v77 = vand.u32 %v76, 127
    %v78 = vadd.s32 %v77, 128
    %v79 = vadd.s32 %v77, 256
    %v80 = vadd.s32 %v77, 384
    %v81 = vand.u32 %v77, 255
    %v82 = vand.u32 %v78, 255
    %v83 = vand.u32 %v79, 255
    %v84 = vand.u32 %v80, 255
    %v85 = vand.u32 %v77, 15
    %v86 = vand.u32 %v78, 15
    %v87 = vand.u32 %v79, 15
    %v88 = vand.u32 %v80, 15
    %vm89 = vcmp.ge.s32.totalorder %v81, 16
    %vm90 = vcmp.ge.s32.totalorder %v82, 16
    %vm91 = vcmp.ge.s32.totalorder %v83, 16
    %vm92 = vcmp.ge.s32.totalorder %v84, 16
    %vm93 = vcmp.ge.s32.totalorder %v85, 1
    %vm94 = vcmp.ge.s32.totalorder %v86, 1
    %vm95 = vcmp.ge.s32.totalorder %v87, 1
    %vm96 = vcmp.ge.s32.totalorder %v88, 1
    %vm97 = vmand %vm89, %vm93
    %vm98 = vmand %vm90, %vm94
    %vm99 = vmand %vm91, %vm95
    %vm100 = vmand %vm92, %vm96
    %vm101 = vcmp.le.s32.totalorder %v85, 14
    %vm102 = vcmp.le.s32.totalorder %v86, 14
    %vm103 = vcmp.le.s32.totalorder %v87, 14
    %vm104 = vcmp.le.s32.totalorder %v88, 14
    %vm105 = vmand %vm89, %vm101
    %vm106 = vmand %vm90, %vm102
    %vm107 = vmand %vm91, %vm103
    %vm108 = vmand %vm92, %vm104
    %vm109 = vcmp.lt.s32.totalorder %v81, 240
    %vm110 = vcmp.lt.s32.totalorder %v82, 240
    %vm111 = vcmp.lt.s32.totalorder %v83, 240
    %vm112 = vcmp.lt.s32.totalorder %v84, 240
    %vm113 = vmand %vm109, %vm93
    %vm114 = vmand %vm110, %vm94
    %vm115 = vmand %vm111, %vm95
    %vm116 = vmand %vm112, %vm96
    %vm117 = vmand %vm109, %vm101
    %vm118 = vmand %vm110, %vm102
    %vm119 = vmand %vm111, %vm103
    %vm120 = vmand %vm112, %vm104
    %121 = vrot.lane.b32.xlu0 %v66, 17
    %v122 = vpop.permute.xlu0 %121
    %123 = vrot.lane.b32.xlu0 %v71, 17
    %v124 = vpop.permute.xlu0 %123
    %125 = vrot.lane.b32.xlu0 %v67, 17
    %v126 = vpop.permute.xlu0 %125
    %127 = vrot.lane.b32.xlu0 %v72, 17
    %v128 = vpop.permute.xlu0 %127
    %129 = vrot.lane.b32.xlu0 %v69, 17
    %v130 = vpop.permute.xlu0 %129
    %131 = vrot.lane.b32.xlu0 %v74, 17
    %v132 = vpop.permute.xlu0 %131
    %133 = vrot.lane.b32.xlu0 %v70, 17
    %v134 = vpop.permute.xlu0 %133
    %135 = vrot.lane.b32.xlu0 %v75, 17
    %v136 = vpop.permute.xlu0 %135
    %vm137 = vcmp.lt.s32.totalorder %v77, 17
    %v138 = vsel %vm137, %v130, %v134
    %v139 = vsel %vm137, %v132, %v136
    %v140 = vsel %vm137, %v126, %v130
    %v141 = vsel %vm137, %v128, %v132
    %v142 = vsel %vm137, %v122, %v126
    %v143 = vsel %vm137, %v124, %v128
    %v144 = vsel %vm137, %v134, %v122
    %v145 = vsel %vm137, %v136, %v124
    %v146 = vsel %vm97, 1, 0
    %v147 = vsel %vm98, 1, 0
    %v148 = vsel %vm99, 1, 0
    %v149 = vsel %vm100, 1, 0
    %vm150 = vcmp.eq.s32.totalorder %v146, 1
    %vm151 = vcmp.eq.s32.totalorder %v147, 1
    %vm152 = vcmp.eq.s32.totalorder %v148, 1
    %vm153 = vcmp.eq.s32.totalorder %v149, 1
    %v154 = vsel %vm150, %v144, 0.0
    %v155 = vsel %vm151, %v142, 0.0
    %v156 = vsel %vm152, %v140, 0.0
    %v157 = vsel %vm153, %v138, 0.0
    %v158 = vsel %vm150, %v145, 0.0
    %v159 = vsel %vm151, %v143, 0.0
    %v160 = vsel %vm152, %v141, 0.0
    %v161 = vsel %vm153, %v139, 0.0
    %162 = vst [vmem:[#allocation2] sm:$0xff] %v154
    %163 = vst [vmem:[#allocation2 + $0x8] sm:$0xff] %v155
    %164 = vst [vmem:[#allocation2 + $0x10] sm:$0xff] %v156
    %165 = vst [vmem:[#allocation2 + $0x18] sm:$0xff] %v157
    %166 = vst [vmem:[#allocation2 + $0x20] sm:$0xff] %v158
    %167 = vst [vmem:[#allocation2 + $0x28] sm:$0xff] %v159
    %168 = vst [vmem:[#allocation2 + $0x30] sm:$0xff] %v160
    %169 = vst [vmem:[#allocation2 + $0x38] sm:$0xff] %v161
    %170 = vrot.lane.b32.xlu0 %v66, 16
    %v171 = vpop.permute.xlu0 %170
    %172 = vrot.lane.b32.xlu0 %v71, 16
    %v173 = vpop.permute.xlu0 %172
    %174 = vrot.lane.b32.xlu0 %v67, 16
    %v175 = vpop.permute.xlu0 %174
    %176 = vrot.lane.b32.xlu0 %v72, 16
    %v177 = vpop.permute.xlu0 %176
    %178 = vrot.lane.b32.xlu0 %v69, 16
    %v179 = vpop.permute.xlu0 %178
    %180 = vrot.lane.b32.xlu0 %v74, 16
    %v181 = vpop.permute.xlu0 %180
    %182 = vrot.lane.b32.xlu0 %v70, 16
    %v183 = vpop.permute.xlu0 %182
    %184 = vrot.lane.b32.xlu0 %v75, 16
    %v185 = vpop.permute.xlu0 %184
    %vm186 = vcmp.lt.s32.totalorder %v77, 16
    %v187 = vsel %vm186, %v179, %v183
    %v188 = vsel %vm186, %v181, %v185
    %v189 = vsel %vm186, %v175, %v179
    %v190 = vsel %vm186, %v177, %v181
    %v191 = vsel %vm186, %v171, %v175
    %v192 = vsel %vm186, %v173, %v177
    %v193 = vsel %vm186, %v183, %v171
    %v194 = vsel %vm186, %v185, %v173
    %v195 = vsel %vm89, 1, 0
    %v196 = vsel %vm90, 1, 0
    %v197 = vsel %vm91, 1, 0
    %v198 = vsel %vm92, 1, 0
    %vm199 = vcmp.eq.s32.totalorder %v195, 1
    %vm200 = vcmp.eq.s32.totalorder %v196, 1
    %vm201 = vcmp.eq.s32.totalorder %v197, 1
    %vm202 = vcmp.eq.s32.totalorder %v198, 1
    %v203 = vsel %vm199, %v193, 0.0
    %v204 = vsel %vm200, %v191, 0.0
    %v205 = vsel %vm201, %v189, 0.0
    %v206 = vsel %vm202, %v187, 0.0
    %v207 = vsel %vm199, %v194, 0.0
    %v208 = vsel %vm200, %v192, 0.0
    %v209 = vsel %vm201, %v190, 0.0
    %v210 = vsel %vm202, %v188, 0.0
    %211 = vst [vmem:[#allocation2 + $0x40] sm:$0xff] %v203
    %212 = vst [vmem:[#allocation2 + $0x48] sm:$0xff] %v204
    %213 = vst [vmem:[#allocation2 + $0x50] sm:$0xff] %v205
    %214 = vst [vmem:[#allocation2 + $0x58] sm:$0xff] %v206
    %215 = vst [vmem:[#allocation2 + $0x60] sm:$0xff] %v207
    %216 = vst [vmem:[#allocation2 + $0x68] sm:$0xff] %v208
    %217 = vst [vmem:[#allocation2 + $0x70] sm:$0xff] %v209
    %218 = vst [vmem:[#allocation2 + $0x78] sm:$0xff] %v210
    %219 = vrot.lane.b32.xlu0 %v66, 15
    %v220 = vpop.permute.xlu0 %219
    %221 = vrot.lane.b32.xlu0 %v71, 15
    %v222 = vpop.permute.xlu0 %221
    %223 = vrot.lane.b32.xlu0 %v67, 15
    %v224 = vpop.permute.xlu0 %223
    %225 = vrot.lane.b32.xlu0 %v72, 15
    %v226 = vpop.permute.xlu0 %225
    %227 = vrot.lane.b32.xlu0 %v69, 15
    %v228 = vpop.permute.xlu0 %227
    %229 = vrot.lane.b32.xlu0 %v74, 15
    %v230 = vpop.permute.xlu0 %229
    %231 = vrot.lane.b32.xlu0 %v70, 15
    %v232 = vpop.permute.xlu0 %231
    %233 = vrot.lane.b32.xlu0 %v75, 15
    %v234 = vpop.permute.xlu0 %233
    %vm235 = vcmp.lt.s32.totalorder %v77, 15
    %v236 = vsel %vm235, %v228, %v232
    %v237 = vsel %vm235, %v230, %v234
    %v238 = vsel %vm235, %v224, %v228
    %v239 = vsel %vm235, %v226, %v230
    %v240 = vsel %vm235, %v220, %v224
    %v241 = vsel %vm235, %v222, %v226
    %v242 = vsel %vm235, %v232, %v220
    %v243 = vsel %vm235, %v234, %v222
    %v244 = vsel %vm105, 1, 0
    %v245 = vsel %vm106, 1, 0
    %v246 = vsel %vm107, 1, 0
    %v247 = vsel %vm108, 1, 0
    %vm248 = vcmp.eq.s32.totalorder %v244, 1
    %vm249 = vcmp.eq.s32.totalorder %v245, 1
    %vm250 = vcmp.eq.s32.totalorder %v246, 1
    %vm251 = vcmp.eq.s32.totalorder %v247, 1
    %v252 = vsel %vm248, %v242, 0.0
    %v253 = vsel %vm249, %v240, 0.0
    %v254 = vsel %vm250, %v238, 0.0
    %v255 = vsel %vm251, %v236, 0.0
    %v256 = vsel %vm248, %v243, 0.0
    %v257 = vsel %vm249, %v241, 0.0
    %v258 = vsel %vm250, %v239, 0.0
    %v259 = vsel %vm251, %v237, 0.0
    %260 = vst [vmem:[#allocation2 + $0x80] sm:$0xff] %v252
    %261 = vst [vmem:[#allocation2 + $0x88] sm:$0xff] %v253
    %262 = vst [vmem:[#allocation2 + $0x90] sm:$0xff] %v254
    %263 = vst [vmem:[#allocation2 + $0x98] sm:$0xff] %v255
    %264 = vst [vmem:[#allocation2 + $0xa0] sm:$0xff] %v256
    %265 = vst [vmem:[#allocation2 + $0xa8] sm:$0xff] %v257
    %266 = vst [vmem:[#allocation2 + $0xb0] sm:$0xff] %v258
    %267 = vst [vmem:[#allocation2 + $0xb8] sm:$0xff] %v259
    %268 = vrot.lane.b32.xlu0 %v66, 1
    %v269 = vpop.permute.xlu0 %268
    %270 = vrot.lane.b32.xlu0 %v71, 1
    %v271 = vpop.permute.xlu0 %270
    %272 = vrot.lane.b32.xlu0 %v67, 1
    %v273 = vpop.permute.xlu0 %272
    %274 = vrot.lane.b32.xlu0 %v72, 1
    %v275 = vpop.permute.xlu0 %274
    %276 = vrot.lane.b32.xlu0 %v69, 1
    %v277 = vpop.permute.xlu0 %276
    %278 = vrot.lane.b32.xlu0 %v74, 1
    %v279 = vpop.permute.xlu0 %278
    %280 = vrot.lane.b32.xlu0 %v70, 1
    %v281 = vpop.permute.xlu0 %280
    %282 = vrot.lane.b32.xlu0 %v75, 1
    %v283 = vpop.permute.xlu0 %282
    %vm284 = vcmp.lt.s32.totalorder %v77, 1
    %v285 = vsel %vm284, %v277, %v281
    %v286 = vsel %vm284, %v279, %v283
    %v287 = vsel %vm284, %v273, %v277
    %v288 = vsel %vm284, %v275, %v279
    %v289 = vsel %vm284, %v269, %v273
    %v290 = vsel %vm284, %v271, %v275
    %v291 = vsel %vm284, %v281, %v269
    %v292 = vsel %vm284, %v283, %v271
    %v293 = vsel %vm93, 1, 0
    %v294 = vsel %vm94, 1, 0
    %v295 = vsel %vm95, 1, 0
    %v296 = vsel %vm96, 1, 0
    %vm297 = vcmp.eq.s32.totalorder %v293, 1
    %vm298 = vcmp.eq.s32.totalorder %v294, 1
    %vm299 = vcmp.eq.s32.totalorder %v295, 1
    %vm300 = vcmp.eq.s32.totalorder %v296, 1
    %v301 = vsel %vm297, %v291, 0.0
    %v302 = vsel %vm298, %v289, 0.0
    %v303 = vsel %vm299, %v287, 0.0
    %v304 = vsel %vm300, %v285, 0.0
    %v305 = vsel %vm297, %v292, 0.0
    %v306 = vsel %vm298, %v290, 0.0
    %v307 = vsel %vm299, %v288, 0.0
    %v308 = vsel %vm300, %v286, 0.0
    %309 = vst [vmem:[#allocation2 + $0xc0] sm:$0xff] %v301
    %310 = vst [vmem:[#allocation2 + $0xc8] sm:$0xff] %v302
    %311 = vst [vmem:[#allocation2 + $0xd0] sm:$0xff] %v303
    %312 = vst [vmem:[#allocation2 + $0xd8] sm:$0xff] %v304
    %313 = vst [vmem:[#allocation2 + $0xe0] sm:$0xff] %v305
    %314 = vst [vmem:[#allocation2 + $0xe8] sm:$0xff] %v306
    %315 = vst [vmem:[#allocation2 + $0xf0] sm:$0xff] %v307
    %316 = vst [vmem:[#allocation2 + $0xf8] sm:$0xff] %v308
    %317 = vst [vmem:[#allocation2 + $0x100] sm:$0xff] %v66
    %318 = vst [vmem:[#allocation2 + $0x108] sm:$0xff] %v67
    %319 = vst [vmem:[#allocation2 + $0x110] sm:$0xff] %v69
    %320 = vst [vmem:[#allocation2 + $0x118] sm:$0xff] %v70
    %321 = vst [vmem:[#allocation2 + $0x120] sm:$0xff] %v71
    %322 = vst [vmem:[#allocation2 + $0x128] sm:$0xff] %v72
    %323 = vst [vmem:[#allocation2 + $0x130] sm:$0xff] %v74
    %324 = vst [vmem:[#allocation2 + $0x138] sm:$0xff] %v75
    %325 = vrot.lane.b32.xlu0 %v66, 127
    %v326 = vpop.permute.xlu0 %325
    %327 = vrot.lane.b32.xlu0 %v71, 127
    %v328 = vpop.permute.xlu0 %327
    %329 = vrot.lane.b32.xlu0 %v67, 127
    %v330 = vpop.permute.xlu0 %329
    %331 = vrot.lane.b32.xlu0 %v72, 127
    %v332 = vpop.permute.xlu0 %331
    %333 = vrot.lane.b32.xlu0 %v69, 127
    %v334 = vpop.permute.xlu0 %333
    %335 = vrot.lane.b32.xlu0 %v74, 127
    %v336 = vpop.permute.xlu0 %335
    %337 = vrot.lane.b32.xlu0 %v70, 127
    %v338 = vpop.permute.xlu0 %337
    %339 = vrot.lane.b32.xlu0 %v75, 127
    %v340 = vpop.permute.xlu0 %339
    %vm341 = vcmp.lt.s32.totalorder %v77, 127
    %v342 = vsel %vm341, %v334, %v338
    %v343 = vsel %vm341, %v336, %v340
    %v344 = vsel %vm341, %v330, %v334
    %v345 = vsel %vm341, %v332, %v336
    %v346 = vsel %vm341, %v326, %v330
    %v347 = vsel %vm341, %v328, %v332
    %v348 = vsel %vm341, %v338, %v326
    %v349 = vsel %vm341, %v340, %v328
    %v350 = vsel %vm101, 1, 0
    %v351 = vsel %vm102, 1, 0
    %v352 = vsel %vm103, 1, 0
    %v353 = vsel %vm104, 1, 0
    %vm354 = vcmp.eq.s32.totalorder %v350, 1
    %vm355 = vcmp.eq.s32.totalorder %v351, 1
    %vm356 = vcmp.eq.s32.totalorder %v352, 1
    %vm357 = vcmp.eq.s32.totalorder %v353, 1
    %v358 = vsel %vm354, %v346, 0.0
    %v359 = vsel %vm355, %v344, 0.0
    %v360 = vsel %vm356, %v342, 0.0
    %v361 = vsel %vm357, %v348, 0.0
    %v362 = vsel %vm354, %v347, 0.0
    %v363 = vsel %vm355, %v345, 0.0
    %v364 = vsel %vm356, %v343, 0.0
    %v365 = vsel %vm357, %v349, 0.0
    %366 = vst [vmem:[#allocation2 + $0x140] sm:$0xff] %v358
    %367 = vst [vmem:[#allocation2 + $0x148] sm:$0xff] %v359
    %368 = vst [vmem:[#allocation2 + $0x150] sm:$0xff] %v360
    %369 = vst [vmem:[#allocation2 + $0x158] sm:$0xff] %v361
    %370 = vst [vmem:[#allocation2 + $0x160] sm:$0xff] %v362
    %371 = vst [vmem:[#allocation2 + $0x168] sm:$0xff] %v363
    %372 = vst [vmem:[#allocation2 + $0x170] sm:$0xff] %v364
    %373 = vst [vmem:[#allocation2 + $0x178] sm:$0xff] %v365
    %374 = vrot.lane.b32.xlu0 %v66, 113
    %v375 = vpop.permute.xlu0 %374
    %376 = vrot.lane.b32.xlu0 %v71, 113
    %v377 = vpop.permute.xlu0 %376
    %378 = vrot.lane.b32.xlu0 %v67, 113
    %v379 = vpop.permute.xlu0 %378
    %380 = vrot.lane.b32.xlu0 %v72, 113
    %v381 = vpop.permute.xlu0 %380
    %382 = vrot.lane.b32.xlu0 %v69, 113
    %v383 = vpop.permute.xlu0 %382
    %384 = vrot.lane.b32.xlu0 %v74, 113
    %v385 = vpop.permute.xlu0 %384
    %386 = vrot.lane.b32.xlu0 %v70, 113
    %v387 = vpop.permute.xlu0 %386
    %388 = vrot.lane.b32.xlu0 %v75, 113
    %v389 = vpop.permute.xlu0 %388
    %vm390 = vcmp.lt.s32.totalorder %v77, 113
    %v391 = vsel %vm390, %v383, %v387
    %v392 = vsel %vm390, %v385, %v389
    %v393 = vsel %vm390, %v379, %v383
    %v394 = vsel %vm390, %v381, %v385
    %v395 = vsel %vm390, %v375, %v379
    %v396 = vsel %vm390, %v377, %v381
    %v397 = vsel %vm390, %v387, %v375
    %v398 = vsel %vm390, %v389, %v377
    %v399 = vsel %vm113, 1, 0
    %v400 = vsel %vm114, 1, 0
    %v401 = vsel %vm115, 1, 0
    %v402 = vsel %vm116, 1, 0
    %vm403 = vcmp.eq.s32.totalorder %v399, 1
    %vm404 = vcmp.eq.s32.totalorder %v400, 1
    %vm405 = vcmp.eq.s32.totalorder %v401, 1
    %vm406 = vcmp.eq.s32.totalorder %v402, 1
    %v407 = vsel %vm403, %v395, 0.0
    %v408 = vsel %vm404, %v393, 0.0
    %v409 = vsel %vm405, %v391, 0.0
    %v410 = vsel %vm406, %v397, 0.0
    %v411 = vsel %vm403, %v396, 0.0
    %v412 = vsel %vm404, %v394, 0.0
    %v413 = vsel %vm405, %v392, 0.0
    %v414 = vsel %vm406, %v398, 0.0
    %415 = vst [vmem:[#allocation2 + $0x180] sm:$0xff] %v407
    %416 = vst [vmem:[#allocation2 + $0x188] sm:$0xff] %v408
    %417 = vst [vmem:[#allocation2 + $0x190] sm:$0xff] %v409
    %418 = vst [vmem:[#allocation2 + $0x198] sm:$0xff] %v410
    %419 = vst [vmem:[#allocation2 + $0x1a0] sm:$0xff] %v411
    %420 = vst [vmem:[#allocation2 + $0x1a8] sm:$0xff] %v412
    %421 = vst [vmem:[#allocation2 + $0x1b0] sm:$0xff] %v413
    %422 = vst [vmem:[#allocation2 + $0x1b8] sm:$0xff] %v414
    %423 = vrot.lane.b32.xlu0 %v66, 112
    %v424 = vpop.permute.xlu0 %423
    %425 = vrot.lane.b32.xlu0 %v71, 112
    %v426 = vpop.permute.xlu0 %425
    %427 = vrot.lane.b32.xlu0 %v67, 112
    %v428 = vpop.permute.xlu0 %427
    %429 = vrot.lane.b32.xlu0 %v72, 112
    %v430 = vpop.permute.xlu0 %429
    %431 = vrot.lane.b32.xlu0 %v69, 112
    %v432 = vpop.permute.xlu0 %431
    %433 = vrot.lane.b32.xlu0 %v74, 112
    %v434 = vpop.permute.xlu0 %433
    %435 = vrot.lane.b32.xlu0 %v70, 112
    %v436 = vpop.permute.xlu0 %435
    %437 = vrot.lane.b32.xlu0 %v75, 112
    %v438 = vpop.permute.xlu0 %437
    %vm439 = vcmp.lt.s32.totalorder %v77, 112
    %v440 = vsel %vm439, %v432, %v436
    %v441 = vsel %vm439, %v434, %v438
    %v442 = vsel %vm439, %v428, %v432
    %v443 = vsel %vm439, %v430, %v434
    %v444 = vsel %vm439, %v424, %v428
    %v445 = vsel %vm439, %v426, %v430
    %v446 = vsel %vm439, %v436, %v424
    %v447 = vsel %vm439, %v438, %v426
    %v448 = vsel %vm109, 1, 0
    %v449 = vsel %vm110, 1, 0
    %v450 = vsel %vm111, 1, 0
    %v451 = vsel %vm112, 1, 0
    %vm452 = vcmp.eq.s32.totalorder %v448, 1
    %vm453 = vcmp.eq.s32.totalorder %v449, 1
    %vm454 = vcmp.eq.s32.totalorder %v450, 1
    %vm455 = vcmp.eq.s32.totalorder %v451, 1
    %v456 = vsel %vm452, %v444, 0.0
    %v457 = vsel %vm453, %v442, 0.0
    %v458 = vsel %vm454, %v440, 0.0
    %v459 = vsel %vm455, %v446, 0.0
    %v460 = vsel %vm452, %v445, 0.0
    %v461 = vsel %vm453, %v443, 0.0
    %v462 = vsel %vm454, %v441, 0.0
    %v463 = vsel %vm455, %v447, 0.0
    %464 = vst [vmem:[#allocation2 + $0x1c0] sm:$0xff] %v456
    %465 = vst [vmem:[#allocation2 + $0x1c8] sm:$0xff] %v457
    %466 = vst [vmem:[#allocation2 + $0x1d0] sm:$0xff] %v458
    %467 = vst [vmem:[#allocation2 + $0x1d8] sm:$0xff] %v459
    %468 = vst [vmem:[#allocation2 + $0x1e0] sm:$0xff] %v460
    %469 = vst [vmem:[#allocation2 + $0x1e8] sm:$0xff] %v461
    %470 = vst [vmem:[#allocation2 + $0x1f0] sm:$0xff] %v462
    %471 = vst [vmem:[#allocation2 + $0x1f8] sm:$0xff] %v463
    %472 = vrot.lane.b32.xlu0 %v66, 111
    %v473 = vpop.permute.xlu0 %472
    %474 = vrot.lane.b32.xlu0 %v71, 111
    %v475 = vpop.permute.xlu0 %474
    %476 = vrot.lane.b32.xlu0 %v67, 111
    %v477 = vpop.permute.xlu0 %476
    %478 = vrot.lane.b32.xlu0 %v72, 111
    %v479 = vpop.permute.xlu0 %478
    %480 = vrot.lane.b32.xlu0 %v69, 111
    %v481 = vpop.permute.xlu0 %480
    %482 = vrot.lane.b32.xlu0 %v74, 111
    %v483 = vpop.permute.xlu0 %482
    %484 = vrot.lane.b32.xlu0 %v70, 111
    %v485 = vpop.permute.xlu0 %484
    %486 = vrot.lane.b32.xlu0 %v75, 111
    %v487 = vpop.permute.xlu0 %486
    %vm488 = vcmp.lt.s32.totalorder %v77, 111
    %v489 = vsel %vm488, %v481, %v485
    %v490 = vsel %vm488, %v483, %v487
    %v491 = vsel %vm488, %v477, %v481
    %v492 = vsel %vm488, %v479, %v483
    %v493 = vsel %vm488, %v473, %v477
    %v494 = vsel %vm488, %v475, %v479
    %v495 = vsel %vm488, %v485, %v473
    %v496 = vsel %vm488, %v487, %v475
    %v497 = vsel %vm117, 1, 0
    %v498 = vsel %vm118, 1, 0
    %v499 = vsel %vm119, 1, 0
    %v500 = vsel %vm120, 1, 0
    %vm501 = vcmp.eq.s32.totalorder %v497, 1
    %vm502 = vcmp.eq.s32.totalorder %v498, 1
    %vm503 = vcmp.eq.s32.totalorder %v499, 1
    %vm504 = vcmp.eq.s32.totalorder %v500, 1
    %v505 = vsel %vm501, %v493, 0.0
    %v506 = vsel %vm502, %v491, 0.0
    %v507 = vsel %vm503, %v489, 0.0
    %v508 = vsel %vm504, %v495, 0.0
    %v509 = vsel %vm501, %v494, 0.0
    %v510 = vsel %vm502, %v492, 0.0
    %v511 = vsel %vm503, %v490, 0.0
    %v512 = vsel %vm504, %v496, 0.0
    %513 = vst [vmem:[#allocation2 + $0x200] sm:$0xff] %v505
    %514 = vst [vmem:[#allocation2 + $0x208] sm:$0xff] %v506
    %515 = vst [vmem:[#allocation2 + $0x210] sm:$0xff] %v507
    %516 = vst [vmem:[#allocation2 + $0x218] sm:$0xff] %v508
    %517 = vst [vmem:[#allocation2 + $0x220] sm:$0xff] %v509
    %518 = vst [vmem:[#allocation2 + $0x228] sm:$0xff] %v510
    %519 = vst [vmem:[#allocation2 + $0x230] sm:$0xff] %v511
    %520 = vst [vmem:[#allocation2 + $0x238] sm:$0xff] %v512
    %v521 = vld [vmem:[#allocation6] sm:$0xff]
    %v522 = vld [vmem:[#allocation6 + $0x8] sm:$0xff]
    %v523 = vld [vmem:[#allocation2] sm:$0xff]
    %v524 = vld [vmem:[#allocation2 + $0x8] sm:$0xff]
    %v525 = vld [vmem:[#allocation2 + $0x10] sm:$0xff]
    %v526 = vld [vmem:[#allocation2 + $0x18] sm:$0xff]
    %v527 = vld [vmem:[#allocation2 + $0x20] sm:$0xff]
    %v528 = vld [vmem:[#allocation2 + $0x28] sm:$0xff]
    %v529 = vld [vmem:[#allocation2 + $0x30] sm:$0xff]
    %v530 = vld [vmem:[#allocation2 + $0x38] sm:$0xff]
    %v531 = vld [vmem:[#allocation2 + $0x40] sm:$0xff]
    %v532 = vld [vmem:[#allocation2 + $0x48] sm:$0xff]
    %v533 = vld [vmem:[#allocation2 + $0x50] sm:$0xff]
    %v534 = vld [vmem:[#allocation2 + $0x58] sm:$0xff]
    %v535 = vld [vmem:[#allocation2 + $0x60] sm:$0xff]
    %v536 = vld [vmem:[#allocation2 + $0x68] sm:$0xff]
    %v537 = vld [vmem:[#allocation2 + $0x70] sm:$0xff]
    %v538 = vld [vmem:[#allocation2 + $0x78] sm:$0xff]
    %v539 = vld [vmem:[#allocation2 + $0x80] sm:$0xff]
    %v540 = vld [vmem:[#allocation2 + $0x88] sm:$0xff]
    %v541 = vld [vmem:[#allocation2 + $0x90] sm:$0xff]
    %v542 = vld [vmem:[#allocation2 + $0x98] sm:$0xff]
    %v543 = vld [vmem:[#allocation2 + $0xa0] sm:$0xff]
    %v544 = vld [vmem:[#allocation2 + $0xa8] sm:$0xff]
    %v545 = vld [vmem:[#allocation2 + $0xb0] sm:$0xff]
    %v546 = vld [vmem:[#allocation2 + $0xb8] sm:$0xff]
    %v547 = vld [vmem:[#allocation2 + $0xc0] sm:$0xff]
    %v548 = vld [vmem:[#allocation2 + $0xc8] sm:$0xff]
    %v549 = vld [vmem:[#allocation2 + $0xd0] sm:$0xff]
    %v550 = vld [vmem:[#allocation2 + $0xd8] sm:$0xff]
    %v551 = vld [vmem:[#allocation2 + $0xe0] sm:$0xff]
    %v552 = vld [vmem:[#allocation2 + $0xe8] sm:$0xff]
    %v553 = vld [vmem:[#allocation2 + $0xf0] sm:$0xff]
    %v554 = vld [vmem:[#allocation2 + $0xf8] sm:$0xff]
    %v555 = vld [vmem:[#allocation2 + $0x100] sm:$0xff]
    %v556 = vld [vmem:[#allocation2 + $0x108] sm:$0xff]
    %v557 = vld [vmem:[#allocation2 + $0x110] sm:$0xff]
    %v558 = vld [vmem:[#allocation2 + $0x118] sm:$0xff]
    %v559 = vld [vmem:[#allocation2 + $0x120] sm:$0xff]
    %v560 = vld [vmem:[#allocation2 + $0x128] sm:$0xff]
    %v561 = vld [vmem:[#allocation2 + $0x130] sm:$0xff]
    %v562 = vld [vmem:[#allocation2 + $0x138] sm:$0xff]
    %v563 = vld [vmem:[#allocation2 + $0x140] sm:$0xff]
    %v564 = vld [vmem:[#allocation2 + $0x148] sm:$0xff]
    %v565 = vld [vmem:[#allocation2 + $0x150] sm:$0xff]
    %v566 = vld [vmem:[#allocation2 + $0x158] sm:$0xff]
    %v567 = vld [vmem:[#allocation2 + $0x160] sm:$0xff]
    %v568 = vld [vmem:[#allocation2 + $0x168] sm:$0xff]
    %v569 = vld [vmem:[#allocation2 + $0x170] sm:$0xff]
    %v570 = vld [vmem:[#allocation2 + $0x178] sm:$0xff]
    %v571 = vld [vmem:[#allocation2 + $0x180] sm:$0xff]
    %v572 = vld [vmem:[#allocation2 + $0x188] sm:$0xff]
    %v573 = vld [vmem:[#allocation2 + $0x190] sm:$0xff]
    %v574 = vld [vmem:[#allocation2 + $0x198] sm:$0xff]
    %v575 = vld [vmem:[#allocation2 + $0x1a0] sm:$0xff]
    %v576 = vld [vmem:[#allocation2 + $0x1a8] sm:$0xff]
    %v577 = vld [vmem:[#allocation2 + $0x1b0] sm:$0xff]
    %v578 = vld [vmem:[#allocation2 + $0x1b8] sm:$0xff]
    %v579 = vld [vmem:[#allocation2 + $0x1c0] sm:$0xff]
    %v580 = vld [vmem:[#allocation2 + $0x1c8] sm:$0xff]
    %v581 = vld [vmem:[#allocation2 + $0x1d0] sm:$0xff]
    %v582 = vld [vmem:[#allocation2 + $0x1d8] sm:$0xff]
    %v583 = vld [vmem:[#allocation2 + $0x1e0] sm:$0xff]
    %v584 = vld [vmem:[#allocation2 + $0x1e8] sm:$0xff]
    %v585 = vld [vmem:[#allocation2 + $0x1f0] sm:$0xff]
    %v586 = vld [vmem:[#allocation2 + $0x1f8] sm:$0xff]
    %v587 = vld [vmem:[#allocation2 + $0x200] sm:$0xff]
    %v588 = vld [vmem:[#allocation2 + $0x208] sm:$0xff]
    %v589 = vld [vmem:[#allocation2 + $0x210] sm:$0xff]
    %v590 = vld [vmem:[#allocation2 + $0x218] sm:$0xff]
    %v591 = vld [vmem:[#allocation2 + $0x220] sm:$0xff]
    %v592 = vld [vmem:[#allocation2 + $0x228] sm:$0xff]
    %v593 = vld [vmem:[#allocation2 + $0x230] sm:$0xff]
    %v594 = vld [vmem:[#allocation2 + $0x238] sm:$0xff]
    %vm595 = vcmask 130048
    %v597 = vsel %vm595, %v522, 0
    %599 = vmatpush.msra.mxu0 %v583
    %600 = vmatpush.msra.mxu0 %v579
    %601 = vmatpush.msra.mxu0 %v575
    %602 = vmatpush.msra.mxu0 %v571
    %603 = vmatpush.msra.mxu0 %v567
    %604 = vmatpush.msra.mxu0 %v563
    %605 = vmatpush.msra.mxu0 %v559
    %606 = vmatpush.msra.mxu0 %v555
    %607 = vmatpush.msra.mxu0 %v551
    %608 = vmatpush.msra.mxu0 %v547
    %609 = vmatpush.msra.mxu0 %v543
    %610 = vmatpush.msra.mxu0 %v539
    %611 = vmatpush.msra.mxu0 %v535
    %612 = vmatpush.msra.mxu0 %v531
    %613 = vmatpush.msra.mxu0 %v527
    %614 = vmatpush.msra.mxu0 %v523
    %615 = vmatmul.f32.gmra.mxu0 %v521
    %v616 = vpop.f32.mrf.mxu0
    %v617 = vadd.f32 0.0, %v616
    %618 = vdwg.mxu0
    %619 = vmatpush.msra.mxu0 0.0
    %620 = vmatpush.msra.mxu0 0.0
    %621 = vmatpush.msra.mxu0 0.0
    %622 = vmatpush.msra.mxu0 0.0
    %623 = vmatpush.msra.mxu0 0.0
    %624 = vmatpush.msra.mxu0 0.0
    %625 = vmatpush.msra.mxu0 0.0
    %626 = vmatpush.msra.mxu0 0.0
    %627 = vmatpush.msra.mxu0 0.0
    %628 = vmatpush.msra.mxu0 0.0
    %629 = vmatpush.msra.mxu0 0.0
    %630 = vmatpush.msra.mxu0 0.0
    %631 = vmatpush.msra.mxu0 0.0
    %632 = vmatpush.msra.mxu0 0.0
    %633 = vmatpush.msra.mxu0 %v591
    %634 = vmatpush.msra.mxu0 %v587
    %635 = vmatmul.f32.gmra.mxu0 %v597
    %v636 = vpop.f32.mrf.mxu0
    %v637 = vadd.f32 %v617, %v636
    %638 = vdwg.mxu0
    %639 = vmatpush.msra.mxu0 %v584
    %640 = vmatpush.msra.mxu0 %v580
    %641 = vmatpush.msra.mxu0 %v576
    %642 = vmatpush.msra.mxu0 %v572
    %643 = vmatpush.msra.mxu0 %v568
    %644 = vmatpush.msra.mxu0 %v564
    %645 = vmatpush.msra.mxu0 %v560
    %646 = vmatpush.msra.mxu0 %v556
    %647 = vmatpush.msra.mxu0 %v552
    %648 = vmatpush.msra.mxu0 %v548
    %649 = vmatpush.msra.mxu0 %v544
    %650 = vmatpush.msra.mxu0 %v540
    %651 = vmatpush.msra.mxu0 %v536
    %652 = vmatpush.msra.mxu0 %v532
    %653 = vmatpush.msra.mxu0 %v528
    %654 = vmatpush.msra.mxu0 %v524
    %655 = vmatmul.f32.gmra.mxu0 %v521
    %v656 = vpop.f32.mrf.mxu0
    %v657 = vadd.f32 0.0, %v656
    %658 = vdwg.mxu0
    %659 = vmatpush.msra.mxu0 0.0
    %660 = vmatpush.msra.mxu0 0.0
    %661 = vmatpush.msra.mxu0 0.0
    %662 = vmatpush.msra.mxu0 0.0
    %663 = vmatpush.msra.mxu0 0.0
    %664 = vmatpush.msra.mxu0 0.0
    %665 = vmatpush.msra.mxu0 0.0
    %666 = vmatpush.msra.mxu0 0.0
    %667 = vmatpush.msra.mxu0 0.0
    %668 = vmatpush.msra.mxu0 0.0
    %669 = vmatpush.msra.mxu0 0.0
    %670 = vmatpush.msra.mxu0 0.0
    %671 = vmatpush.msra.mxu0 0.0
    %672 = vmatpush.msra.mxu0 0.0
    %673 = vmatpush.msra.mxu0 %v592
    %674 = vmatpush.msra.mxu0 %v588
    %675 = vmatmul.f32.gmra.mxu0 %v597
    %v676 = vpop.f32.mrf.mxu0
    %v677 = vadd.f32 %v657, %v676
    %678 = vdwg.mxu0
    %679 = vmatpush.msra.mxu0 %v585
    %680 = vmatpush.msra.mxu0 %v581
    %681 = vmatpush.msra.mxu0 %v577
    %682 = vmatpush.msra.mxu0 %v573
    %683 = vmatpush.msra.mxu0 %v569
    %684 = vmatpush.msra.mxu0 %v565
    %685 = vmatpush.msra.mxu0 %v561
    %686 = vmatpush.msra.mxu0 %v557
    %687 = vmatpush.msra.mxu0 %v553
    %688 = vmatpush.msra.mxu0 %v549
    %689 = vmatpush.msra.mxu0 %v545
    %690 = vmatpush.msra.mxu0 %v541
    %691 = vmatpush.msra.mxu0 %v537
    %692 = vmatpush.msra.mxu0 %v533
    %693 = vmatpush.msra.mxu0 %v529
    %694 = vmatpush.msra.mxu0 %v525
    %695 = vmatmul.f32.gmra.mxu0 %v521
    %v696 = vpop.f32.mrf.mxu0
    %v697 = vadd.f32 0.0, %v696
    %698 = vdwg.mxu0
    %699 = vmatpush.msra.mxu0 0.0
    %700 = vmatpush.msra.mxu0 0.0
    %701 = vmatpush.msra.mxu0 0.0
    %702 = vmatpush.msra.mxu0 0.0
    %703 = vmatpush.msra.mxu0 0.0
    %704 = vmatpush.msra.mxu0 0.0
    %705 = vmatpush.msra.mxu0 0.0
    %706 = vmatpush.msra.mxu0 0.0
    %707 = vmatpush.msra.mxu0 0.0
    %708 = vmatpush.msra.mxu0 0.0
    %709 = vmatpush.msra.mxu0 0.0
    %710 = vmatpush.msra.mxu0 0.0
    %711 = vmatpush.msra.mxu0 0.0
    %712 = vmatpush.msra.mxu0 0.0
    %713 = vmatpush.msra.mxu0 %v593
    %714 = vmatpush.msra.mxu0 %v589
    %715 = vmatmul.f32.gmra.mxu0 %v597
    %v716 = vpop.f32.mrf.mxu0
    %v717 = vadd.f32 %v697, %v716
    %718 = vdwg.mxu0
    %719 = vmatpush.msra.mxu0 %v586
    %720 = vmatpush.msra.mxu0 %v582
    %721 = vmatpush.msra.mxu0 %v578
    %722 = vmatpush.msra.mxu0 %v574
    %723 = vmatpush.msra.mxu0 %v570
    %724 = vmatpush.msra.mxu0 %v566
    %725 = vmatpush.msra.mxu0 %v562
    %726 = vmatpush.msra.mxu0 %v558
    %727 = vmatpush.msra.mxu0 %v554
    %728 = vmatpush.msra.mxu0 %v550
    %729 = vmatpush.msra.mxu0 %v546
    %730 = vmatpush.msra.mxu0 %v542
    %731 = vmatpush.msra.mxu0 %v538
    %732 = vmatpush.msra.mxu0 %v534
    %733 = vmatpush.msra.mxu0 %v530
    %734 = vmatpush.msra.mxu0 %v526
    %735 = vmatmul.f32.gmra.mxu0 %v521
    %v736 = vpop.f32.mrf.mxu0
    %v737 = vadd.f32 0.0, %v736
    %738 = vdwg.mxu0
    %739 = vmatpush.msra.mxu0 0.0
    %740 = vmatpush.msra.mxu0 0.0
    %741 = vmatpush.msra.mxu0 0.0
    %742 = vmatpush.msra.mxu0 0.0
    %743 = vmatpush.msra.mxu0 0.0
    %744 = vmatpush.msra.mxu0 0.0
    %745 = vmatpush.msra.mxu0 0.0
    %746 = vmatpush.msra.mxu0 0.0
    %747 = vmatpush.msra.mxu0 0.0
    %748 = vmatpush.msra.mxu0 0.0
    %749 = vmatpush.msra.mxu0 0.0
    %750 = vmatpush.msra.mxu0 0.0
    %751 = vmatpush.msra.mxu0 0.0
    %752 = vmatpush.msra.mxu0 0.0
    %753 = vmatpush.msra.mxu0 %v594
    %754 = vmatpush.msra.mxu0 %v590
    %755 = vmatmul.f32.gmra.mxu0 %v597
    %v756 = vpop.f32.mrf.mxu0
    %v757 = vadd.f32 %v737, %v756
    %758 = vdwg.mxu0
    %v759 = vld [vmem:[%s3] sm:$0xff]
    %761 = vset.pattern.permute.xlu0 0
    %762 = vperm.xlu0 %761, %v759
    %v763 = vpop.permute.xlu0 %762
    %v765 = vmul.f32 %v637, %v763
    %v766 = vmul.f32 %v677, %v763
    %v767 = vmul.f32 %v717, %v763
    %v768 = vmul.f32 %v757, %v763
    %v769 = vld [vmem:[%s4] sm:$0xff]
    %771 = vset.pattern.permute.xlu0 0
    %772 = vperm.xlu0 %771, %v769
    %v773 = vpop.permute.xlu0 %772
    %v775 = vadd.f32 %v765, %v773
    %v776 = vadd.f32 %v766, %v773
    %v777 = vadd.f32 %v767, %v773
    %v778 = vadd.f32 %v768, %v773
    %v779 = vmax.f32 %v775, 0.0
    %v780 = vmax.f32 %v776, 0.0
    %v781 = vmax.f32 %v777, 0.0
    %v782 = vmax.f32 %v778, 0.0
    %783 = vrot.lane.b32.xlu0 %v779, 17
    %v784 = vpop.permute.xlu0 %783
    %785 = vrot.lane.b32.xlu0 %v780, 17
    %v786 = vpop.permute.xlu0 %785
    %787 = vrot.lane.b32.xlu0 %v781, 17
    %v788 = vpop.permute.xlu0 %787
    %789 = vrot.lane.b32.xlu0 %v782, 17
    %v790 = vpop.permute.xlu0 %789
    %v791 = vsel %vm137, %v788, %v790
    %v792 = vsel %vm137, %v786, %v788
    %v793 = vsel %vm137, %v784, %v786
    %v794 = vsel %vm137, %v790, %v784
    %v795 = vsel %vm150, %v794, 0.0
    %v796 = vsel %vm151, %v793, 0.0
    %v797 = vsel %vm152, %v792, 0.0
    %v798 = vsel %vm153, %v791, 0.0
    %799 = vrot.lane.b32.xlu0 %v779, 16
    %v800 = vpop.permute.xlu0 %799
    %801 = vrot.lane.b32.xlu0 %v780, 16
    %v802 = vpop.permute.xlu0 %801
    %803 = vrot.lane.b32.xlu0 %v781, 16
    %v804 = vpop.permute.xlu0 %803
    %805 = vrot.lane.b32.xlu0 %v782, 16
    %v806 = vpop.permute.xlu0 %805
    %v807 = vsel %vm186, %v804, %v806
    %v808 = vsel %vm186, %v802, %v804
    %v809 = vsel %vm186, %v800, %v802
    %v810 = vsel %vm186, %v806, %v800
    %v811 = vsel %vm199, %v810, 0.0
    %v812 = vsel %vm200, %v809, 0.0
    %v813 = vsel %vm201, %v808, 0.0
    %v814 = vsel %vm202, %v807, 0.0
    %815 = vrot.lane.b32.xlu0 %v779, 15
    %v816 = vpop.permute.xlu0 %815
    %817 = vrot.lane.b32.xlu0 %v780, 15
    %v818 = vpop.permute.xlu0 %817
    %819 = vrot.lane.b32.xlu0 %v781, 15
    %v820 = vpop.permute.xlu0 %819
    %821 = vrot.lane.b32.xlu0 %v782, 15
    %v822 = vpop.permute.xlu0 %821
    %v823 = vsel %vm235, %v820, %v822
    %v824 = vsel %vm235, %v818, %v820
    %v825 = vsel %vm235, %v816, %v818
    %v826 = vsel %vm235, %v822, %v816
    %v827 = vsel %vm248, %v826, 0.0
    %v828 = vsel %vm249, %v825, 0.0
    %v829 = vsel %vm250, %v824, 0.0
    %v830 = vsel %vm251, %v823, 0.0
    %831 = vrot.lane.b32.xlu0 %v779, 1
    %v832 = vpop.permute.xlu0 %831
    %833 = vrot.lane.b32.xlu0 %v780, 1
    %v834 = vpop.permute.xlu0 %833
    %835 = vrot.lane.b32.xlu0 %v781, 1
    %v836 = vpop.permute.xlu0 %835
    %837 = vrot.lane.b32.xlu0 %v782, 1
    %v838 = vpop.permute.xlu0 %837
    %v839 = vsel %vm284, %v836, %v838
    %v840 = vsel %vm284, %v834, %v836
    %v841 = vsel %vm284, %v832, %v834
    %v842 = vsel %vm284, %v838, %v832
    %v843 = vsel %vm297, %v842, 0.0
    %v844 = vsel %vm298, %v841, 0.0
    %v845 = vsel %vm299, %v840, 0.0
    %v846 = vsel %vm300, %v839, 0.0
    %847 = vrot.lane.b32.xlu0 %v779, 127
    %v848 = vpop.permute.xlu0 %847
    %849 = vrot.lane.b32.xlu0 %v780, 127
    %v850 = vpop.permute.xlu0 %849
    %851 = vrot.lane.b32.xlu0 %v781, 127
    %v852 = vpop.permute.xlu0 %851
    %853 = vrot.lane.b32.xlu0 %v782, 127
    %v854 = vpop.permute.xlu0 %853
    %v855 = vsel %vm341, %v852, %v854
    %v856 = vsel %vm341, %v850, %v852
    %v857 = vsel %vm341, %v848, %v850
    %v858 = vsel %vm341, %v854, %v848
    %v859 = vsel %vm354, %v857, 0.0
    %v860 = vsel %vm355, %v856, 0.0
    %v861 = vsel %vm356, %v855, 0.0
    %v862 = vsel %vm357, %v858, 0.0
    %863 = vrot.lane.b32.xlu0 %v779, 113
    %v864 = vpop.permute.xlu0 %863
    %865 = vrot.lane.b32.xlu0 %v780, 113
    %v866 = vpop.permute.xlu0 %865
    %867 = vrot.lane.b32.xlu0 %v781, 113
    %v868 = vpop.permute.xlu0 %867
    %869 = vrot.lane.b32.xlu0 %v782, 113
    %v870 = vpop.permute.xlu0 %869
    %v871 = vsel %vm390, %v868, %v870
    %v872 = vsel %vm390, %v866, %v868
    %v873 = vsel %vm390, %v864, %v866
    %v874 = vsel %vm390, %v870, %v864
    %v875 = vsel %vm403, %v873, 0.0
    %v876 = vsel %vm404, %v872, 0.0
    %v877 = vsel %vm405, %v871, 0.0
    %v878 = vsel %vm406, %v874, 0.0
    %879 = vrot.lane.b32.xlu0 %v779, 112
    %v880 = vpop.permute.xlu0 %879
    %881 = vrot.lane.b32.xlu0 %v780, 112
    %v882 = vpop.permute.xlu0 %881
    %883 = vrot.lane.b32.xlu0 %v781, 112
    %v884 = vpop.permute.xlu0 %883
    %885 = vrot.lane.b32.xlu0 %v782, 112
    %v886 = vpop.permute.xlu0 %885
    %v887 = vsel %vm439, %v884, %v886
    %v888 = vsel %vm439, %v882, %v884
    %v889 = vsel %vm439, %v880, %v882
    %v890 = vsel %vm439, %v886, %v880
    %v891 = vsel %vm452, %v889, 0.0
    %v892 = vsel %vm453, %v888, 0.0
    %v893 = vsel %vm454, %v887, 0.0
    %v894 = vsel %vm455, %v890, 0.0
    %895 = vrot.lane.b32.xlu0 %v779, 111
    %v896 = vpop.permute.xlu0 %895
    %897 = vrot.lane.b32.xlu0 %v780, 111
    %v898 = vpop.permute.xlu0 %897
    %899 = vrot.lane.b32.xlu0 %v781, 111
    %v900 = vpop.permute.xlu0 %899
    %901 = vrot.lane.b32.xlu0 %v782, 111
    %v902 = vpop.permute.xlu0 %901
    %v903 = vsel %vm488, %v900, %v902
    %v904 = vsel %vm488, %v898, %v900
    %v905 = vsel %vm488, %v896, %v898
    %v906 = vsel %vm488, %v902, %v896
    %v907 = vsel %vm501, %v905, 0.0
    %v908 = vsel %vm502, %v904, 0.0
    %v909 = vsel %vm503, %v903, 0.0
    %v910 = vsel %vm504, %v906, 0.0
    %v911 = vld [vmem:[%s5] sm:$0xf]
    %vm912 = vcmask 588800
    %v914 = vsel %vm912, %v911, 0
    %916 = vmatpush.msra.mxu0 0.0
    %917 = vmatpush.msra.mxu0 0.0
    %918 = vmatpush.msra.mxu0 0.0
    %919 = vmatpush.msra.mxu0 0.0
    %920 = vmatpush.msra.mxu0 0.0
    %921 = vmatpush.msra.mxu0 0.0
    %922 = vmatpush.msra.mxu0 0.0
    %923 = vmatpush.msra.mxu0 %v907
    %924 = vmatpush.msra.mxu0 %v891
    %925 = vmatpush.msra.mxu0 %v875
    %926 = vmatpush.msra.mxu0 %v859
    %927 = vmatpush.msra.mxu0 %v779
    %928 = vmatpush.msra.mxu0 %v843
    %929 = vmatpush.msra.mxu0 %v827
    %930 = vmatpush.msra.mxu0 %v811
    %931 = vmatpush.msra.mxu0 %v795
    %932 = vmatmul.f32.gmra.mxu0 %v914
    %v933 = vpop.f32.mrf.mxu0
    %v934 = vadd.f32 0.0, %v933
    %935 = vdwg.mxu0
    %936 = vmatpush.msra.mxu0 0.0
    %937 = vmatpush.msra.mxu0 0.0
    %938 = vmatpush.msra.mxu0 0.0
    %939 = vmatpush.msra.mxu0 0.0
    %940 = vmatpush.msra.mxu0 0.0
    %941 = vmatpush.msra.mxu0 0.0
    %942 = vmatpush.msra.mxu0 0.0
    %943 = vmatpush.msra.mxu0 %v908
    %944 = vmatpush.msra.mxu0 %v892
    %945 = vmatpush.msra.mxu0 %v876
    %946 = vmatpush.msra.mxu0 %v860
    %947 = vmatpush.msra.mxu0 %v780
    %948 = vmatpush.msra.mxu0 %v844
    %949 = vmatpush.msra.mxu0 %v828
    %950 = vmatpush.msra.mxu0 %v812
    %951 = vmatpush.msra.mxu0 %v796
    %952 = vmatmul.f32.gmra.mxu0 %v914
    %v953 = vpop.f32.mrf.mxu0
    %v954 = vadd.f32 0.0, %v953
    %955 = vdwg.mxu0
    %956 = vmatpush.msra.mxu0 0.0
    %957 = vmatpush.msra.mxu0 0.0
    %958 = vmatpush.msra.mxu0 0.0
    %959 = vmatpush.msra.mxu0 0.0
    %960 = vmatpush.msra.mxu0 0.0
    %961 = vmatpush.msra.mxu0 0.0
    %962 = vmatpush.msra.mxu0 0.0
    %963 = vmatpush.msra.mxu0 %v909
    %964 = vmatpush.msra.mxu0 %v893
    %965 = vmatpush.msra.mxu0 %v877
    %966 = vmatpush.msra.mxu0 %v861
    %967 = vmatpush.msra.mxu0 %v781
    %968 = vmatpush.msra.mxu0 %v845
    %969 = vmatpush.msra.mxu0 %v829
    %970 = vmatpush.msra.mxu0 %v813
    %971 = vmatpush.msra.mxu0 %v797
    %972 = vmatmul.f32.gmra.mxu0 %v914
    %v973 = vpop.f32.mrf.mxu0
    %v974 = vadd.f32 0.0, %v973
    %975 = vdwg.mxu0
    %976 = vmatpush.msra.mxu0 0.0
    %977 = vmatpush.msra.mxu0 0.0
    %978 = vmatpush.msra.mxu0 0.0
    %979 = vmatpush.msra.mxu0 0.0
    %980 = vmatpush.msra.mxu0 0.0
    %981 = vmatpush.msra.mxu0 0.0
    %982 = vmatpush.msra.mxu0 0.0
    %983 = vmatpush.msra.mxu0 %v910
    %984 = vmatpush.msra.mxu0 %v894
    %985 = vmatpush.msra.mxu0 %v878
    %986 = vmatpush.msra.mxu0 %v862
    %987 = vmatpush.msra.mxu0 %v782
    %988 = vmatpush.msra.mxu0 %v846
    %989 = vmatpush.msra.mxu0 %v830
    %990 = vmatpush.msra.mxu0 %v814
    %991 = vmatpush.msra.mxu0 %v798
    %992 = vmatmul.f32.gmra.mxu0 %v914
    %v993 = vpop.f32.mrf.mxu0
    %v994 = vadd.f32 0.0, %v993
    %995 = vdwg.mxu0
    %v996 = vld [vmem:[%s6] sm:$0xf]
    %998 = vset.pattern.permute.xlu0 0
    %999 = vperm.xlu0 %998, %v996
    %v1000 = vpop.permute.xlu0 %999
    %v1002 = vmul.f32 %v934, %v1000
    %v1003 = vmul.f32 %v954, %v1000
    %v1004 = vmul.f32 %v974, %v1000
    %v1005 = vmul.f32 %v994, %v1000
    %v1006 = vld [vmem:[%s7] sm:$0xf]
    %1008 = vset.pattern.permute.xlu0 0
    %1009 = vperm.xlu0 %1008, %v1006
    %v1010 = vpop.permute.xlu0 %1009
    %v1012 = vadd.f32 %v1002, %v1010
    %v1013 = vadd.f32 %v1003, %v1010
    %v1014 = vadd.f32 %v1004, %v1010
    %v1015 = vadd.f32 %v1005, %v1010
    %v1016 = vmax.f32 %v1012, 0.0
    %v1017 = vmax.f32 %v1013, 0.0
    %v1018 = vmax.f32 %v1014, 0.0
    %v1019 = vmax.f32 %v1015, 0.0
    %v1020 = vld [vmem:[%s8] sm:$0x3]
    %1021 = vrot.lane.b32.xlu0 %v1016, 17
    %v1022 = vpop.permute.xlu0 %1021
    %1023 = vrot.lane.b32.xlu0 %v1017, 17
    %v1024 = vpop.permute.xlu0 %1023
    %1025 = vrot.lane.b32.xlu0 %v1018, 17
    %v1026 = vpop.permute.xlu0 %1025
    %1027 = vrot.lane.b32.xlu0 %v1019, 17
    %v1028 = vpop.permute.xlu0 %1027
    %v1029 = vsel %vm137, %v1026, %v1028
    %v1030 = vsel %vm137, %v1024, %v1026
    %v1031 = vsel %vm137, %v1022, %v1024
    %v1032 = vsel %vm137, %v1028, %v1022
    %v1033 = vsel %vm150, %v1032, 0.0
    %v1034 = vsel %vm151, %v1031, 0.0
    %v1035 = vsel %vm152, %v1030, 0.0
    %v1036 = vsel %vm153, %v1029, 0.0
    %s1037 = scalar_lea.vmem %s8, 2
    %v1038 = vld [vmem:[%s1037] sm:$0x3]
    %1039 = vrot.lane.b32.xlu0 %v1016, 16
    %v1040 = vpop.permute.xlu0 %1039
    %1041 = vrot.lane.b32.xlu0 %v1017, 16
    %v1042 = vpop.permute.xlu0 %1041
    %1043 = vrot.lane.b32.xlu0 %v1018, 16
    %v1044 = vpop.permute.xlu0 %1043
    %1045 = vrot.lane.b32.xlu0 %v1019, 16
    %v1046 = vpop.permute.xlu0 %1045
    %v1047 = vsel %vm186, %v1044, %v1046
    %v1048 = vsel %vm186, %v1042, %v1044
    %v1049 = vsel %vm186, %v1040, %v1042
    %v1050 = vsel %vm186, %v1046, %v1040
    %v1051 = vsel %vm199, %v1050, 0.0
    %v1052 = vsel %vm200, %v1049, 0.0
    %v1053 = vsel %vm201, %v1048, 0.0
    %v1054 = vsel %vm202, %v1047, 0.0
    %vm1055 = vcmask 31744
    %v1057 = vsel %vm1055, %v1038, 0
    %vm1059 = vcmask 1043456
    %v1061 = vsel %vm1059, %v1051, 0
    %v1064 = vsel %vm1059, %v1052, 0
    %v1067 = vsel %vm1059, %v1053, 0
    %v1070 = vsel %vm1059, %v1054, 0
    %1072 = vmatpush.msra.mxu0 0.0
    %1073 = vmatpush.msra.mxu0 0.0
    %1074 = vmatpush.msra.mxu0 0.0
    %1075 = vmatpush.msra.mxu0 0.0
    %1076 = vmatpush.msra.mxu0 0.0
    %1077 = vmatpush.msra.mxu0 0.0
    %1078 = vmatpush.msra.mxu0 0.0
    %1079 = vmatpush.msra.mxu0 0.0
    %1080 = vmatpush.msra.mxu0 0.0
    %1081 = vmatpush.msra.mxu0 0.0
    %1082 = vmatpush.msra.mxu0 0.0
    %1083 = vmatpush.msra.mxu0 0.0
    %1084 = vmatpush.msra.mxu0 0.0
    %1085 = vmatpush.msra.mxu0 0.0
    %1086 = vmatpush.msra.mxu0 0.0
    %1087 = vmatpush.msra.mxu0 %v1061
    %1088 = vmatmul.f32.gmra.mxu0 %v1057
    %v1089 = vpop.f32.mrf.mxu0
    %v1090 = vadd.f32 0.0, %v1089
    %1091 = vdwg.mxu0
    %1092 = vmatpush.msra.mxu0 0.0
    %1093 = vmatpush.msra.mxu0 0.0
    %1094 = vmatpush.msra.mxu0 0.0
    %1095 = vmatpush.msra.mxu0 0.0
    %1096 = vmatpush.msra.mxu0 0.0
    %1097 = vmatpush.msra.mxu0 0.0
    %1098 = vmatpush.msra.mxu0 0.0
    %1099 = vmatpush.msra.mxu0 0.0
    %1100 = vmatpush.msra.mxu0 0.0
    %1101 = vmatpush.msra.mxu0 0.0
    %1102 = vmatpush.msra.mxu0 0.0
    %1103 = vmatpush.msra.mxu0 0.0
    %1104 = vmatpush.msra.mxu0 0.0
    %1105 = vmatpush.msra.mxu0 0.0
    %1106 = vmatpush.msra.mxu0 0.0
    %1107 = vmatpush.msra.mxu0 %v1064
    %1108 = vmatmul.f32.gmra.mxu0 %v1057
    %v1109 = vpop.f32.mrf.mxu0
    %v1110 = vadd.f32 0.0, %v1109
    %1111 = vdwg.mxu0
    %1112 = vmatpush.msra.mxu0 0.0
    %1113 = vmatpush.msra.mxu0 0.0
    %1114 = vmatpush.msra.mxu0 0.0
    %1115 = vmatpush.msra.mxu0 0.0
    %1116 = vmatpush.msra.mxu0 0.0
    %1117 = vmatpush.msra.mxu0 0.0
    %1118 = vmatpush.msra.mxu0 0.0
    %1119 = vmatpush.msra.mxu0 0.0
    %1120 = vmatpush.msra.mxu0 0.0
    %1121 = vmatpush.msra.mxu0 0.0
    %1122 = vmatpush.msra.mxu0 0.0
    %1123 = vmatpush.msra.mxu0 0.0
    %1124 = vmatpush.msra.mxu0 0.0
    %1125 = vmatpush.msra.mxu0 0.0
    %1126 = vmatpush.msra.mxu0 0.0
    %1127 = vmatpush.msra.mxu0 %v1067
    %1128 = vmatmul.f32.gmra.mxu0 %v1057
    %v1129 = vpop.f32.mrf.mxu0
    %v1130 = vadd.f32 0.0, %v1129
    %1131 = vdwg.mxu0
    %1132 = vmatpush.msra.mxu0 0.0
    %1133 = vmatpush.msra.mxu0 0.0
    %1134 = vmatpush.msra.mxu0 0.0
    %1135 = vmatpush.msra.mxu0 0.0
    %1136 = vmatpush.msra.mxu0 0.0
    %1137 = vmatpush.msra.mxu0 0.0
    %1138 = vmatpush.msra.mxu0 0.0
    %1139 = vmatpush.msra.mxu0 0.0
    %1140 = vmatpush.msra.mxu0 0.0
    %1141 = vmatpush.msra.mxu0 0.0
    %1142 = vmatpush.msra.mxu0 0.0
    %1143 = vmatpush.msra.mxu0 0.0
    %1144 = vmatpush.msra.mxu0 0.0
    %1145 = vmatpush.msra.mxu0 0.0
    %1146 = vmatpush.msra.mxu0 0.0
    %1147 = vmatpush.msra.mxu0 %v1070
    %1148 = vmatmul.f32.gmra.mxu0 %v1057
    %v1149 = vpop.f32.mrf.mxu0
    %v1150 = vadd.f32 0.0, %v1149
    %1151 = vdwg.mxu0
    %v1153 = vsel %vm1055, %v1020, 0
    %v1156 = vsel %vm1059, %v1033, 0
    %v1159 = vsel %vm1059, %v1034, 0
    %v1162 = vsel %vm1059, %v1035, 0
    %v1165 = vsel %vm1059, %v1036, 0
    %1167 = vmatpush.msra.mxu0 0.0
    %1168 = vmatpush.msra.mxu0 0.0
    %1169 = vmatpush.msra.mxu0 0.0
    %1170 = vmatpush.msra.mxu0 0.0
    %1171 = vmatpush.msra.mxu0 0.0
    %1172 = vmatpush.msra.mxu0 0.0
    %1173 = vmatpush.msra.mxu0 0.0
    %1174 = vmatpush.msra.mxu0 0.0
    %1175 = vmatpush.msra.mxu0 0.0
    %1176 = vmatpush.msra.mxu0 0.0
    %1177 = vmatpush.msra.mxu0 0.0
    %1178 = vmatpush.msra.mxu0 0.0
    %1179 = vmatpush.msra.mxu0 0.0
    %1180 = vmatpush.msra.mxu0 0.0
    %1181 = vmatpush.msra.mxu0 0.0
    %1182 = vmatpush.msra.mxu0 %v1156
    %1183 = vmatmul.f32.gmra.mxu0 %v1153
    %v1184 = vpop.f32.mrf.mxu0
    %v1185 = vadd.f32 %v1090, %v1184
    %1186 = vdwg.mxu0
    %1187 = vmatpush.msra.mxu0 0.0
    %1188 = vmatpush.msra.mxu0 0.0
    %1189 = vmatpush.msra.mxu0 0.0
    %1190 = vmatpush.msra.mxu0 0.0
    %1191 = vmatpush.msra.mxu0 0.0
    %1192 = vmatpush.msra.mxu0 0.0
    %1193 = vmatpush.msra.mxu0 0.0
    %1194 = vmatpush.msra.mxu0 0.0
    %1195 = vmatpush.msra.mxu0 0.0
    %1196 = vmatpush.msra.mxu0 0.0
    %1197 = vmatpush.msra.mxu0 0.0
    %1198 = vmatpush.msra.mxu0 0.0
    %1199 = vmatpush.msra.mxu0 0.0
    %1200 = vmatpush.msra.mxu0 0.0
    %1201 = vmatpush.msra.mxu0 0.0
    %1202 = vmatpush.msra.mxu0 %v1159
    %1203 = vmatmul.f32.gmra.mxu0 %v1153
    %v1204 = vpop.f32.mrf.mxu0
    %v1205 = vadd.f32 %v1110, %v1204
    %1206 = vdwg.mxu0
    %1207 = vmatpush.msra.mxu0 0.0
    %1208 = vmatpush.msra.mxu0 0.0
    %1209 = vmatpush.msra.mxu0 0.0
    %1210 = vmatpush.msra.mxu0 0.0
    %1211 = vmatpush.msra.mxu0 0.0
    %1212 = vmatpush.msra.mxu0 0.0
    %1213 = vmatpush.msra.mxu0 0.0
    %1214 = vmatpush.msra.mxu0 0.0
    %1215 = vmatpush.msra.mxu0 0.0
    %1216 = vmatpush.msra.mxu0 0.0
    %1217 = vmatpush.msra.mxu0 0.0
    %1218 = vmatpush.msra.mxu0 0.0
    %1219 = vmatpush.msra.mxu0 0.0
    %1220 = vmatpush.msra.mxu0 0.0
    %1221 = vmatpush.msra.mxu0 0.0
    %1222 = vmatpush.msra.mxu0 %v1162
    %1223 = vmatmul.f32.gmra.mxu0 %v1153
    %v1224 = vpop.f32.mrf.mxu0
    %v1225 = vadd.f32 %v1130, %v1224
    %1226 = vdwg.mxu0
    %1227 = vmatpush.msra.mxu0 0.0
    %1228 = vmatpush.msra.mxu0 0.0
    %1229 = vmatpush.msra.mxu0 0.0
    %1230 = vmatpush.msra.mxu0 0.0
    %1231 = vmatpush.msra.mxu0 0.0
    %1232 = vmatpush.msra.mxu0 0.0
    %1233 = vmatpush.msra.mxu0 0.0
    %1234 = vmatpush.msra.mxu0 0.0
    %1235 = vmatpush.msra.mxu0 0.0
    %1236 = vmatpush.msra.mxu0 0.0
    %1237 = vmatpush.msra.mxu0 0.0
    %1238 = vmatpush.msra.mxu0 0.0
    %1239 = vmatpush.msra.mxu0 0.0
    %1240 = vmatpush.msra.mxu0 0.0
    %1241 = vmatpush.msra.mxu0 0.0
    %1242 = vmatpush.msra.mxu0 %v1165
    %1243 = vmatmul.f32.gmra.mxu0 %v1153
    %v1244 = vpop.f32.mrf.mxu0
    %v1245 = vadd.f32 %v1150, %v1244
    %1246 = vdwg.mxu0
    %s1247 = scalar_lea.vmem %s8, 4
    %v1248 = vld [vmem:[%s1247] sm:$0x3]
    %1249 = vrot.lane.b32.xlu0 %v1016, 15
    %v1250 = vpop.permute.xlu0 %1249
    %1251 = vrot.lane.b32.xlu0 %v1017, 15
    %v1252 = vpop.permute.xlu0 %1251
    %1253 = vrot.lane.b32.xlu0 %v1018, 15
    %v1254 = vpop.permute.xlu0 %1253
    %1255 = vrot.lane.b32.xlu0 %v1019, 15
    %v1256 = vpop.permute.xlu0 %1255
    %v1257 = vsel %vm235, %v1254, %v1256
    %v1258 = vsel %vm235, %v1252, %v1254
    %v1259 = vsel %vm235, %v1250, %v1252
    %v1260 = vsel %vm235, %v1256, %v1250
    %v1261 = vsel %vm248, %v1260, 0.0
    %v1262 = vsel %vm249, %v1259, 0.0
    %v1263 = vsel %vm250, %v1258, 0.0
    %v1264 = vsel %vm251, %v1257, 0.0
    %v1266 = vsel %vm1055, %v1248, 0
    %v1269 = vsel %vm1059, %v1261, 0
    %v1272 = vsel %vm1059, %v1262, 0
    %v1275 = vsel %vm1059, %v1263, 0
    %v1278 = vsel %vm1059, %v1264, 0
    %1280 = vmatpush.msra.mxu0 0.0
    %1281 = vmatpush.msra.mxu0 0.0
    %1282 = vmatpush.msra.mxu0 0.0
    %1283 = vmatpush.msra.mxu0 0.0
    %1284 = vmatpush.msra.mxu0 0.0
    %1285 = vmatpush.msra.mxu0 0.0
    %1286 = vmatpush.msra.mxu0 0.0
    %1287 = vmatpush.msra.mxu0 0.0
    %1288 = vmatpush.msra.mxu0 0.0
    %1289 = vmatpush.msra.mxu0 0.0
    %1290 = vmatpush.msra.mxu0 0.0
    %1291 = vmatpush.msra.mxu0 0.0
    %1292 = vmatpush.msra.mxu0 0.0
    %1293 = vmatpush.msra.mxu0 0.0
    %1294 = vmatpush.msra.mxu0 0.0
    %1295 = vmatpush.msra.mxu0 %v1269
    %1296 = vmatmul.f32.gmra.mxu0 %v1266
    %v1297 = vpop.f32.mrf.mxu0
    %v1298 = vadd.f32 0.0, %v1297
    %1299 = vdwg.mxu0
    %1300 = vmatpush.msra.mxu0 0.0
    %1301 = vmatpush.msra.mxu0 0.0
    %1302 = vmatpush.msra.mxu0 0.0
    %1303 = vmatpush.msra.mxu0 0.0
    %1304 = vmatpush.msra.mxu0 0.0
    %1305 = vmatpush.msra.mxu0 0.0
    %1306 = vmatpush.msra.mxu0 0.0
    %1307 = vmatpush.msra.mxu0 0.0
    %1308 = vmatpush.msra.mxu0 0.0
    %1309 = vmatpush.msra.mxu0 0.0
    %1310 = vmatpush.msra.mxu0 0.0
    %1311 = vmatpush.msra.mxu0 0.0
    %1312 = vmatpush.msra.mxu0 0.0
    %1313 = vmatpush.msra.mxu0 0.0
    %1314 = vmatpush.msra.mxu0 0.0
    %1315 = vmatpush.msra.mxu0 %v1272
    %1316 = vmatmul.f32.gmra.mxu0 %v1266
    %v1317 = vpop.f32.mrf.mxu0
    %v1318 = vadd.f32 0.0, %v1317
    %1319 = vdwg.mxu0
    %1320 = vmatpush.msra.mxu0 0.0
    %1321 = vmatpush.msra.mxu0 0.0
    %1322 = vmatpush.msra.mxu0 0.0
    %1323 = vmatpush.msra.mxu0 0.0
    %1324 = vmatpush.msra.mxu0 0.0
    %1325 = vmatpush.msra.mxu0 0.0
    %1326 = vmatpush.msra.mxu0 0.0
    %1327 = vmatpush.msra.mxu0 0.0
    %1328 = vmatpush.msra.mxu0 0.0
    %1329 = vmatpush.msra.mxu0 0.0
    %1330 = vmatpush.msra.mxu0 0.0
    %1331 = vmatpush.msra.mxu0 0.0
    %1332 = vmatpush.msra.mxu0 0.0
    %1333 = vmatpush.msra.mxu0 0.0
    %1334 = vmatpush.msra.mxu0 0.0
    %1335 = vmatpush.msra.mxu0 %v1275
    %1336 = vmatmul.f32.gmra.mxu0 %v1266
    %v1337 = vpop.f32.mrf.mxu0
    %v1338 = vadd.f32 0.0, %v1337
    %1339 = vdwg.mxu0
    %1340 = vmatpush.msra.mxu0 0.0
    %1341 = vmatpush.msra.mxu0 0.0
    %1342 = vmatpush.msra.mxu0 0.0
    %1343 = vmatpush.msra.mxu0 0.0
    %1344 = vmatpush.msra.mxu0 0.0
    %1345 = vmatpush.msra.mxu0 0.0
    %1346 = vmatpush.msra.mxu0 0.0
    %1347 = vmatpush.msra.mxu0 0.0
    %1348 = vmatpush.msra.mxu0 0.0
    %1349 = vmatpush.msra.mxu0 0.0
    %1350 = vmatpush.msra.mxu0 0.0
    %1351 = vmatpush.msra.mxu0 0.0
    %1352 = vmatpush.msra.mxu0 0.0
    %1353 = vmatpush.msra.mxu0 0.0
    %1354 = vmatpush.msra.mxu0 0.0
    %1355 = vmatpush.msra.mxu0 %v1278
    %1356 = vmatmul.f32.gmra.mxu0 %v1266
    %v1357 = vpop.f32.mrf.mxu0
    %v1358 = vadd.f32 0.0, %v1357
    %1359 = vdwg.mxu0
    %v1360 = vadd.f32 %v1185, %v1298
    %v1361 = vadd.f32 %v1205, %v1318
    %v1362 = vadd.f32 %v1225, %v1338
    %v1363 = vadd.f32 %v1245, %v1358
    %s1364 = scalar_lea.vmem %s8, 6
    %v1365 = vld [vmem:[%s1364] sm:$0x3]
    %1366 = vrot.lane.b32.xlu0 %v1016, 1
    %v1367 = vpop.permute.xlu0 %1366
    %1368 = vrot.lane.b32.xlu0 %v1017, 1
    %v1369 = vpop.permute.xlu0 %1368
    %1370 = vrot.lane.b32.xlu0 %v1018, 1
    %v1371 = vpop.permute.xlu0 %1370
    %1372 = vrot.lane.b32.xlu0 %v1019, 1
    %v1373 = vpop.permute.xlu0 %1372
    %v1374 = vsel %vm284, %v1371, %v1373
    %v1375 = vsel %vm284, %v1369, %v1371
    %v1376 = vsel %vm284, %v1367, %v1369
    %v1377 = vsel %vm284, %v1373, %v1367
    %v1378 = vsel %vm297, %v1377, 0.0
    %v1379 = vsel %vm298, %v1376, 0.0
    %v1380 = vsel %vm299, %v1375, 0.0
    %v1381 = vsel %vm300, %v1374, 0.0
    %v1383 = vsel %vm1055, %v1365, 0
    %v1386 = vsel %vm1059, %v1378, 0
    %v1389 = vsel %vm1059, %v1379, 0
    %v1392 = vsel %vm1059, %v1380, 0
    %v1395 = vsel %vm1059, %v1381, 0
    %1397 = vmatpush.msra.mxu0 0.0
    %1398 = vmatpush.msra.mxu0 0.0
    %1399 = vmatpush.msra.mxu0 0.0
    %1400 = vmatpush.msra.mxu0 0.0
    %1401 = vmatpush.msra.mxu0 0.0
    %1402 = vmatpush.msra.mxu0 0.0
    %1403 = vmatpush.msra.mxu0 0.0
    %1404 = vmatpush.msra.mxu0 0.0
    %1405 = vmatpush.msra.mxu0 0.0
    %1406 = vmatpush.msra.mxu0 0.0
    %1407 = vmatpush.msra.mxu0 0.0
    %1408 = vmatpush.msra.mxu0 0.0
    %1409 = vmatpush.msra.mxu0 0.0
    %1410 = vmatpush.msra.mxu0 0.0
    %1411 = vmatpush.msra.mxu0 0.0
    %1412 = vmatpush.msra.mxu0 %v1386
    %1413 = vmatmul.f32.gmra.mxu0 %v1383
    %v1414 = vpop.f32.mrf.mxu0
    %v1415 = vadd.f32 0.0, %v1414
    %1416 = vdwg.mxu0
    %1417 = vmatpush.msra.mxu0 0.0
    %1418 = vmatpush.msra.mxu0 0.0
    %1419 = vmatpush.msra.mxu0 0.0
    %1420 = vmatpush.msra.mxu0 0.0
    %1421 = vmatpush.msra.mxu0 0.0
    %1422 = vmatpush.msra.mxu0 0.0
    %1423 = vmatpush.msra.mxu0 0.0
    %1424 = vmatpush.msra.mxu0 0.0
    %1425 = vmatpush.msra.mxu0 0.0
    %1426 = vmatpush.msra.mxu0 0.0
    %1427 = vmatpush.msra.mxu0 0.0
    %1428 = vmatpush.msra.mxu0 0.0
    %1429 = vmatpush.msra.mxu0 0.0
    %1430 = vmatpush.msra.mxu0 0.0
    %1431 = vmatpush.msra.mxu0 0.0
    %1432 = vmatpush.msra.mxu0 %v1389
    %1433 = vmatmul.f32.gmra.mxu0 %v1383
    %v1434 = vpop.f32.mrf.mxu0
    %v1435 = vadd.f32 0.0, %v1434
    %1436 = vdwg.mxu0
    %1437 = vmatpush.msra.mxu0 0.0
    %1438 = vmatpush.msra.mxu0 0.0
    %1439 = vmatpush.msra.mxu0 0.0
    %1440 = vmatpush.msra.mxu0 0.0
    %1441 = vmatpush.msra.mxu0 0.0
    %1442 = vmatpush.msra.mxu0 0.0
    %1443 = vmatpush.msra.mxu0 0.0
    %1444 = vmatpush.msra.mxu0 0.0
    %1445 = vmatpush.msra.mxu0 0.0
    %1446 = vmatpush.msra.mxu0 0.0
    %1447 = vmatpush.msra.mxu0 0.0
    %1448 = vmatpush.msra.mxu0 0.0
    %1449 = vmatpush.msra.mxu0 0.0
    %1450 = vmatpush.msra.mxu0 0.0
    %1451 = vmatpush.msra.mxu0 0.0
    %1452 = vmatpush.msra.mxu0 %v1392
    %1453 = vmatmul.f32.gmra.mxu0 %v1383
    %v1454 = vpop.f32.mrf.mxu0
    %v1455 = vadd.f32 0.0, %v1454
    %1456 = vdwg.mxu0
    %1457 = vmatpush.msra.mxu0 0.0
    %1458 = vmatpush.msra.mxu0 0.0
    %1459 = vmatpush.msra.mxu0 0.0
    %1460 = vmatpush.msra.mxu0 0.0
    %1461 = vmatpush.msra.mxu0 0.0
    %1462 = vmatpush.msra.mxu0 0.0
    %1463 = vmatpush.msra.mxu0 0.0
    %1464 = vmatpush.msra.mxu0 0.0
    %1465 = vmatpush.msra.mxu0 0.0
    %1466 = vmatpush.msra.mxu0 0.0
    %1467 = vmatpush.msra.mxu0 0.0
    %1468 = vmatpush.msra.mxu0 0.0
    %1469 = vmatpush.msra.mxu0 0.0
    %1470 = vmatpush.msra.mxu0 0.0
    %1471 = vmatpush.msra.mxu0 0.0
    %1472 = vmatpush.msra.mxu0 %v1395
    %1473 = vmatmul.f32.gmra.mxu0 %v1383
    %v1474 = vpop.f32.mrf.mxu0
    %v1475 = vadd.f32 0.0, %v1474
    %1476 = vdwg.mxu0
    %v1477 = vadd.f32 %v1360, %v1415
    %v1478 = vadd.f32 %v1361, %v1435
    %v1479 = vadd.f32 %v1362, %v1455
    %v1480 = vadd.f32 %v1363, %v1475
    %s1481 = scalar_lea.vmem %s8, 8
    %v1482 = vld [vmem:[%s1481] sm:$0x3]
    %v1484 = vsel %vm1055, %v1482, 0
    %v1487 = vsel %vm1059, %v1016, 0
    %v1490 = vsel %vm1059, %v1017, 0
    %v1493 = vsel %vm1059, %v1018, 0
    %v1496 = vsel %vm1059, %v1019, 0
    %1498 = vmatpush.msra.mxu0 0.0
    %1499 = vmatpush.msra.mxu0 0.0
    %1500 = vmatpush.msra.mxu0 0.0
    %1501 = vmatpush.msra.mxu0 0.0
    %1502 = vmatpush.msra.mxu0 0.0
    %1503 = vmatpush.msra.mxu0 0.0
    %1504 = vmatpush.msra.mxu0 0.0
    %1505 = vmatpush.msra.mxu0 0.0
    %1506 = vmatpush.msra.mxu0 0.0
    %1507 = vmatpush.msra.mxu0 0.0
    %1508 = vmatpush.msra.mxu0 0.0
    %1509 = vmatpush.msra.mxu0 0.0
    %1510 = vmatpush.msra.mxu0 0.0
    %1511 = vmatpush.msra.mxu0 0.0
    %1512 = vmatpush.msra.mxu0 0.0
    %1513 = vmatpush.msra.mxu0 %v1487
    %1514 = vmatmul.f32.gmra.mxu0 %v1484
    %v1515 = vpop.f32.mrf.mxu0
    %v1516 = vadd.f32 0.0, %v1515
    %1517 = vdwg.mxu0
    %1518 = vmatpush.msra.mxu0 0.0
    %1519 = vmatpush.msra.mxu0 0.0
    %1520 = vmatpush.msra.mxu0 0.0
    %1521 = vmatpush.msra.mxu0 0.0
    %1522 = vmatpush.msra.mxu0 0.0
    %1523 = vmatpush.msra.mxu0 0.0
    %1524 = vmatpush.msra.mxu0 0.0
    %1525 = vmatpush.msra.mxu0 0.0
    %1526 = vmatpush.msra.mxu0 0.0
    %1527 = vmatpush.msra.mxu0 0.0
    %1528 = vmatpush.msra.mxu0 0.0
    %1529 = vmatpush.msra.mxu0 0.0
    %1530 = vmatpush.msra.mxu0 0.0
    %1531 = vmatpush.msra.mxu0 0.0
    %1532 = vmatpush.msra.mxu0 0.0
    %1533 = vmatpush.msra.mxu0 %v1490
    %1534 = vmatmul.f32.gmra.mxu0 %v1484
    %v1535 = vpop.f32.mrf.mxu0
    %v1536 = vadd.f32 0.0, %v1535
    %1537 = vdwg.mxu0
    %1538 = vmatpush.msra.mxu0 0.0
    %1539 = vmatpush.msra.mxu0 0.0
    %1540 = vmatpush.msra.mxu0 0.0
    %1541 = vmatpush.msra.mxu0 0.0
    %1542 = vmatpush.msra.mxu0 0.0
    %1543 = vmatpush.msra.mxu0 0.0
    %1544 = vmatpush.msra.mxu0 0.0
    %1545 = vmatpush.msra.mxu0 0.0
    %1546 = vmatpush.msra.mxu0 0.0
    %1547 = vmatpush.msra.mxu0 0.0
    %1548 = vmatpush.msra.mxu0 0.0
    %1549 = vmatpush.msra.mxu0 0.0
    %1550 = vmatpush.msra.mxu0 0.0
    %1551 = vmatpush.msra.mxu0 0.0
    %1552 = vmatpush.msra.mxu0 0.0
    %1553 = vmatpush.msra.mxu0 %v1493
    %1554 = vmatmul.f32.gmra.mxu0 %v1484
    %v1555 = vpop.f32.mrf.mxu0
    %v1556 = vadd.f32 0.0, %v1555
    %1557 = vdwg.mxu0
    %1558 = vmatpush.msra.mxu0 0.0
    %1559 = vmatpush.msra.mxu0 0.0
    %1560 = vmatpush.msra.mxu0 0.0
    %1561 = vmatpush.msra.mxu0 0.0
    %1562 = vmatpush.msra.mxu0 0.0
    %1563 = vmatpush.msra.mxu0 0.0
    %1564 = vmatpush.msra.mxu0 0.0
    %1565 = vmatpush.msra.mxu0 0.0
    %1566 = vmatpush.msra.mxu0 0.0
    %1567 = vmatpush.msra.mxu0 0.0
    %1568 = vmatpush.msra.mxu0 0.0
    %1569 = vmatpush.msra.mxu0 0.0
    %1570 = vmatpush.msra.mxu0 0.0
    %1571 = vmatpush.msra.mxu0 0.0
    %1572 = vmatpush.msra.mxu0 0.0
    %1573 = vmatpush.msra.mxu0 %v1496
    %1574 = vmatmul.f32.gmra.mxu0 %v1484
    %v1575 = vpop.f32.mrf.mxu0
    %v1576 = vadd.f32 0.0, %v1575
    %1577 = vdwg.mxu0
    %v1578 = vadd.f32 %v1477, %v1516
    %v1579 = vadd.f32 %v1478, %v1536
    %v1580 = vadd.f32 %v1479, %v1556
    %v1581 = vadd.f32 %v1480, %v1576
    %s1582 = scalar_lea.vmem %s8, 10
    %v1583 = vld [vmem:[%s1582] sm:$0x3]
    %1584 = vrot.lane.b32.xlu0 %v1016, 127
    %v1585 = vpop.permute.xlu0 %1584
    %1586 = vrot.lane.b32.xlu0 %v1017, 127
    %v1587 = vpop.permute.xlu0 %1586
    %1588 = vrot.lane.b32.xlu0 %v1018, 127
    %v1589 = vpop.permute.xlu0 %1588
    %1590 = vrot.lane.b32.xlu0 %v1019, 127
    %v1591 = vpop.permute.xlu0 %1590
    %v1592 = vsel %vm341, %v1589, %v1591
    %v1593 = vsel %vm341, %v1587, %v1589
    %v1594 = vsel %vm341, %v1585, %v1587
    %v1595 = vsel %vm341, %v1591, %v1585
    %v1596 = vsel %vm354, %v1594, 0.0
    %v1597 = vsel %vm355, %v1593, 0.0
    %v1598 = vsel %vm356, %v1592, 0.0
    %v1599 = vsel %vm357, %v1595, 0.0
    %v1601 = vsel %vm1055, %v1583, 0
    %v1604 = vsel %vm1059, %v1596, 0
    %v1607 = vsel %vm1059, %v1597, 0
    %v1610 = vsel %vm1059, %v1598, 0
    %v1613 = vsel %vm1059, %v1599, 0
    %1615 = vmatpush.msra.mxu0 0.0
    %1616 = vmatpush.msra.mxu0 0.0
    %1617 = vmatpush.msra.mxu0 0.0
    %1618 = vmatpush.msra.mxu0 0.0
    %1619 = vmatpush.msra.mxu0 0.0
    %1620 = vmatpush.msra.mxu0 0.0
    %1621 = vmatpush.msra.mxu0 0.0
    %1622 = vmatpush.msra.mxu0 0.0
    %1623 = vmatpush.msra.mxu0 0.0
    %1624 = vmatpush.msra.mxu0 0.0
    %1625 = vmatpush.msra.mxu0 0.0
    %1626 = vmatpush.msra.mxu0 0.0
    %1627 = vmatpush.msra.mxu0 0.0
    %1628 = vmatpush.msra.mxu0 0.0
    %1629 = vmatpush.msra.mxu0 0.0
    %1630 = vmatpush.msra.mxu0 %v1604
    %1631 = vmatmul.f32.gmra.mxu0 %v1601
    %v1632 = vpop.f32.mrf.mxu0
    %v1633 = vadd.f32 0.0, %v1632
    %1634 = vdwg.mxu0
    %1635 = vmatpush.msra.mxu0 0.0
    %1636 = vmatpush.msra.mxu0 0.0
    %1637 = vmatpush.msra.mxu0 0.0
    %1638 = vmatpush.msra.mxu0 0.0
    %1639 = vmatpush.msra.mxu0 0.0
    %1640 = vmatpush.msra.mxu0 0.0
    %1641 = vmatpush.msra.mxu0 0.0
    %1642 = vmatpush.msra.mxu0 0.0
    %1643 = vmatpush.msra.mxu0 0.0
    %1644 = vmatpush.msra.mxu0 0.0
    %1645 = vmatpush.msra.mxu0 0.0
    %1646 = vmatpush.msra.mxu0 0.0
    %1647 = vmatpush.msra.mxu0 0.0
    %1648 = vmatpush.msra.mxu0 0.0
    %1649 = vmatpush.msra.mxu0 0.0
    %1650 = vmatpush.msra.mxu0 %v1607
    %1651 = vmatmul.f32.gmra.mxu0 %v1601
    %v1652 = vpop.f32.mrf.mxu0
    %v1653 = vadd.f32 0.0, %v1652
    %1654 = vdwg.mxu0
    %1655 = vmatpush.msra.mxu0 0.0
    %1656 = vmatpush.msra.mxu0 0.0
    %1657 = vmatpush.msra.mxu0 0.0
    %1658 = vmatpush.msra.mxu0 0.0
    %1659 = vmatpush.msra.mxu0 0.0
    %1660 = vmatpush.msra.mxu0 0.0
    %1661 = vmatpush.msra.mxu0 0.0
    %1662 = vmatpush.msra.mxu0 0.0
    %1663 = vmatpush.msra.mxu0 0.0
    %1664 = vmatpush.msra.mxu0 0.0
    %1665 = vmatpush.msra.mxu0 0.0
    %1666 = vmatpush.msra.mxu0 0.0
    %1667 = vmatpush.msra.mxu0 0.0
    %1668 = vmatpush.msra.mxu0 0.0
    %1669 = vmatpush.msra.mxu0 0.0
    %1670 = vmatpush.msra.mxu0 %v1610
    %1671 = vmatmul.f32.gmra.mxu0 %v1601
    %v1672 = vpop.f32.mrf.mxu0
    %v1673 = vadd.f32 0.0, %v1672
    %1674 = vdwg.mxu0
    %1675 = vmatpush.msra.mxu0 0.0
    %1676 = vmatpush.msra.mxu0 0.0
    %1677 = vmatpush.msra.mxu0 0.0
    %1678 = vmatpush.msra.mxu0 0.0
    %1679 = vmatpush.msra.mxu0 0.0
    %1680 = vmatpush.msra.mxu0 0.0
    %1681 = vmatpush.msra.mxu0 0.0
    %1682 = vmatpush.msra.mxu0 0.0
    %1683 = vmatpush.msra.mxu0 0.0
    %1684 = vmatpush.msra.mxu0 0.0
    %1685 = vmatpush.msra.mxu0 0.0
    %1686 = vmatpush.msra.mxu0 0.0
    %1687 = vmatpush.msra.mxu0 0.0
    %1688 = vmatpush.msra.mxu0 0.0
    %1689 = vmatpush.msra.mxu0 0.0
    %1690 = vmatpush.msra.mxu0 %v1613
    %1691 = vmatmul.f32.gmra.mxu0 %v1601
    %v1692 = vpop.f32.mrf.mxu0
    %v1693 = vadd.f32 0.0, %v1692
    %1694 = vdwg.mxu0
    %v1695 = vadd.f32 %v1578, %v1633
    %v1696 = vadd.f32 %v1579, %v1653
    %v1697 = vadd.f32 %v1580, %v1673
    %v1698 = vadd.f32 %v1581, %v1693
    %s1699 = scalar_lea.vmem %s8, 12
    %v1700 = vld [vmem:[%s1699] sm:$0x3]
    %1701 = vrot.lane.b32.xlu0 %v1016, 113
    %v1702 = vpop.permute.xlu0 %1701
    %1703 = vrot.lane.b32.xlu0 %v1017, 113
    %v1704 = vpop.permute.xlu0 %1703
    %1705 = vrot.lane.b32.xlu0 %v1018, 113
    %v1706 = vpop.permute.xlu0 %1705
    %1707 = vrot.lane.b32.xlu0 %v1019, 113
    %v1708 = vpop.permute.xlu0 %1707
    %v1709 = vsel %vm390, %v1706, %v1708
    %v1710 = vsel %vm390, %v1704, %v1706
    %v1711 = vsel %vm390, %v1702, %v1704
    %v1712 = vsel %vm390, %v1708, %v1702
    %v1713 = vsel %vm403, %v1711, 0.0
    %v1714 = vsel %vm404, %v1710, 0.0
    %v1715 = vsel %vm405, %v1709, 0.0
    %v1716 = vsel %vm406, %v1712, 0.0
    %v1718 = vsel %vm1055, %v1700, 0
    %v1721 = vsel %vm1059, %v1713, 0
    %v1724 = vsel %vm1059, %v1714, 0
    %v1727 = vsel %vm1059, %v1715, 0
    %v1730 = vsel %vm1059, %v1716, 0
    %1732 = vmatpush.msra.mxu0 0.0
    %1733 = vmatpush.msra.mxu0 0.0
    %1734 = vmatpush.msra.mxu0 0.0
    %1735 = vmatpush.msra.mxu0 0.0
    %1736 = vmatpush.msra.mxu0 0.0
    %1737 = vmatpush.msra.mxu0 0.0
    %1738 = vmatpush.msra.mxu0 0.0
    %1739 = vmatpush.msra.mxu0 0.0
    %1740 = vmatpush.msra.mxu0 0.0
    %1741 = vmatpush.msra.mxu0 0.0
    %1742 = vmatpush.msra.mxu0 0.0
    %1743 = vmatpush.msra.mxu0 0.0
    %1744 = vmatpush.msra.mxu0 0.0
    %1745 = vmatpush.msra.mxu0 0.0
    %1746 = vmatpush.msra.mxu0 0.0
    %1747 = vmatpush.msra.mxu0 %v1721
    %1748 = vmatmul.f32.gmra.mxu0 %v1718
    %v1749 = vpop.f32.mrf.mxu0
    %v1750 = vadd.f32 0.0, %v1749
    %1751 = vdwg.mxu0
    %1752 = vmatpush.msra.mxu0 0.0
    %1753 = vmatpush.msra.mxu0 0.0
    %1754 = vmatpush.msra.mxu0 0.0
    %1755 = vmatpush.msra.mxu0 0.0
    %1756 = vmatpush.msra.mxu0 0.0
    %1757 = vmatpush.msra.mxu0 0.0
    %1758 = vmatpush.msra.mxu0 0.0
    %1759 = vmatpush.msra.mxu0 0.0
    %1760 = vmatpush.msra.mxu0 0.0
    %1761 = vmatpush.msra.mxu0 0.0
    %1762 = vmatpush.msra.mxu0 0.0
    %1763 = vmatpush.msra.mxu0 0.0
    %1764 = vmatpush.msra.mxu0 0.0
    %1765 = vmatpush.msra.mxu0 0.0
    %1766 = vmatpush.msra.mxu0 0.0
    %1767 = vmatpush.msra.mxu0 %v1724
    %1768 = vmatmul.f32.gmra.mxu0 %v1718
    %v1769 = vpop.f32.mrf.mxu0
    %v1770 = vadd.f32 0.0, %v1769
    %1771 = vdwg.mxu0
    %1772 = vmatpush.msra.mxu0 0.0
    %1773 = vmatpush.msra.mxu0 0.0
    %1774 = vmatpush.msra.mxu0 0.0
    %1775 = vmatpush.msra.mxu0 0.0
    %1776 = vmatpush.msra.mxu0 0.0
    %1777 = vmatpush.msra.mxu0 0.0
    %1778 = vmatpush.msra.mxu0 0.0
    %1779 = vmatpush.msra.mxu0 0.0
    %1780 = vmatpush.msra.mxu0 0.0
    %1781 = vmatpush.msra.mxu0 0.0
    %1782 = vmatpush.msra.mxu0 0.0
    %1783 = vmatpush.msra.mxu0 0.0
    %1784 = vmatpush.msra.mxu0 0.0
    %1785 = vmatpush.msra.mxu0 0.0
    %1786 = vmatpush.msra.mxu0 0.0
    %1787 = vmatpush.msra.mxu0 %v1727
    %1788 = vmatmul.f32.gmra.mxu0 %v1718
    %v1789 = vpop.f32.mrf.mxu0
    %v1790 = vadd.f32 0.0, %v1789
    %1791 = vdwg.mxu0
    %1792 = vmatpush.msra.mxu0 0.0
    %1793 = vmatpush.msra.mxu0 0.0
    %1794 = vmatpush.msra.mxu0 0.0
    %1795 = vmatpush.msra.mxu0 0.0
    %1796 = vmatpush.msra.mxu0 0.0
    %1797 = vmatpush.msra.mxu0 0.0
    %1798 = vmatpush.msra.mxu0 0.0
    %1799 = vmatpush.msra.mxu0 0.0
    %1800 = vmatpush.msra.mxu0 0.0
    %1801 = vmatpush.msra.mxu0 0.0
    %1802 = vmatpush.msra.mxu0 0.0
    %1803 = vmatpush.msra.mxu0 0.0
    %1804 = vmatpush.msra.mxu0 0.0
    %1805 = vmatpush.msra.mxu0 0.0
    %1806 = vmatpush.msra.mxu0 0.0
    %1807 = vmatpush.msra.mxu0 %v1730
    %1808 = vmatmul.f32.gmra.mxu0 %v1718
    %v1809 = vpop.f32.mrf.mxu0
    %v1810 = vadd.f32 0.0, %v1809
    %1811 = vdwg.mxu0
    %v1812 = vadd.f32 %v1695, %v1750
    %v1813 = vadd.f32 %v1696, %v1770
    %v1814 = vadd.f32 %v1697, %v1790
    %v1815 = vadd.f32 %v1698, %v1810
    %s1816 = scalar_lea.vmem %s8, 14
    %v1817 = vld [vmem:[%s1816] sm:$0x3]
    %1818 = vrot.lane.b32.xlu0 %v1016, 112
    %v1819 = vpop.permute.xlu0 %1818
    %1820 = vrot.lane.b32.xlu0 %v1017, 112
    %v1821 = vpop.permute.xlu0 %1820
    %1822 = vrot.lane.b32.xlu0 %v1018, 112
    %v1823 = vpop.permute.xlu0 %1822
    %1824 = vrot.lane.b32.xlu0 %v1019, 112
    %v1825 = vpop.permute.xlu0 %1824
    %v1826 = vsel %vm439, %v1823, %v1825
    %v1827 = vsel %vm439, %v1821, %v1823
    %v1828 = vsel %vm439, %v1819, %v1821
    %v1829 = vsel %vm439, %v1825, %v1819
    %v1830 = vsel %vm452, %v1828, 0.0
    %v1831 = vsel %vm453, %v1827, 0.0
    %v1832 = vsel %vm454, %v1826, 0.0
    %v1833 = vsel %vm455, %v1829, 0.0
    %v1835 = vsel %vm1055, %v1817, 0
    %v1838 = vsel %vm1059, %v1830, 0
    %v1841 = vsel %vm1059, %v1831, 0
    %v1844 = vsel %vm1059, %v1832, 0
    %v1847 = vsel %vm1059, %v1833, 0
    %1849 = vmatpush.msra.mxu0 0.0
    %1850 = vmatpush.msra.mxu0 0.0
    %1851 = vmatpush.msra.mxu0 0.0
    %1852 = vmatpush.msra.mxu0 0.0
    %1853 = vmatpush.msra.mxu0 0.0
    %1854 = vmatpush.msra.mxu0 0.0
    %1855 = vmatpush.msra.mxu0 0.0
    %1856 = vmatpush.msra.mxu0 0.0
    %1857 = vmatpush.msra.mxu0 0.0
    %1858 = vmatpush.msra.mxu0 0.0
    %1859 = vmatpush.msra.mxu0 0.0
    %1860 = vmatpush.msra.mxu0 0.0
    %1861 = vmatpush.msra.mxu0 0.0
    %1862 = vmatpush.msra.mxu0 0.0
    %1863 = vmatpush.msra.mxu0 0.0
    %1864 = vmatpush.msra.mxu0 %v1838
    %1865 = vmatmul.f32.gmra.mxu0 %v1835
    %v1866 = vpop.f32.mrf.mxu0
    %v1867 = vadd.f32 0.0, %v1866
    %1868 = vdwg.mxu0
    %1869 = vmatpush.msra.mxu0 0.0
    %1870 = vmatpush.msra.mxu0 0.0
    %1871 = vmatpush.msra.mxu0 0.0
    %1872 = vmatpush.msra.mxu0 0.0
    %1873 = vmatpush.msra.mxu0 0.0
    %1874 = vmatpush.msra.mxu0 0.0
    %1875 = vmatpush.msra.mxu0 0.0
    %1876 = vmatpush.msra.mxu0 0.0
    %1877 = vmatpush.msra.mxu0 0.0
    %1878 = vmatpush.msra.mxu0 0.0
    %1879 = vmatpush.msra.mxu0 0.0
    %1880 = vmatpush.msra.mxu0 0.0
    %1881 = vmatpush.msra.mxu0 0.0
    %1882 = vmatpush.msra.mxu0 0.0
    %1883 = vmatpush.msra.mxu0 0.0
    %1884 = vmatpush.msra.mxu0 %v1841
    %1885 = vmatmul.f32.gmra.mxu0 %v1835
    %v1886 = vpop.f32.mrf.mxu0
    %v1887 = vadd.f32 0.0, %v1886
    %1888 = vdwg.mxu0
    %1889 = vmatpush.msra.mxu0 0.0
    %1890 = vmatpush.msra.mxu0 0.0
    %1891 = vmatpush.msra.mxu0 0.0
    %1892 = vmatpush.msra.mxu0 0.0
    %1893 = vmatpush.msra.mxu0 0.0
    %1894 = vmatpush.msra.mxu0 0.0
    %1895 = vmatpush.msra.mxu0 0.0
    %1896 = vmatpush.msra.mxu0 0.0
    %1897 = vmatpush.msra.mxu0 0.0
    %1898 = vmatpush.msra.mxu0 0.0
    %1899 = vmatpush.msra.mxu0 0.0
    %1900 = vmatpush.msra.mxu0 0.0
    %1901 = vmatpush.msra.mxu0 0.0
    %1902 = vmatpush.msra.mxu0 0.0
    %1903 = vmatpush.msra.mxu0 0.0
    %1904 = vmatpush.msra.mxu0 %v1844
    %1905 = vmatmul.f32.gmra.mxu0 %v1835
    %v1906 = vpop.f32.mrf.mxu0
    %v1907 = vadd.f32 0.0, %v1906
    %1908 = vdwg.mxu0
    %1909 = vmatpush.msra.mxu0 0.0
    %1910 = vmatpush.msra.mxu0 0.0
    %1911 = vmatpush.msra.mxu0 0.0
    %1912 = vmatpush.msra.mxu0 0.0
    %1913 = vmatpush.msra.mxu0 0.0
    %1914 = vmatpush.msra.mxu0 0.0
    %1915 = vmatpush.msra.mxu0 0.0
    %1916 = vmatpush.msra.mxu0 0.0
    %1917 = vmatpush.msra.mxu0 0.0
    %1918 = vmatpush.msra.mxu0 0.0
    %1919 = vmatpush.msra.mxu0 0.0
    %1920 = vmatpush.msra.mxu0 0.0
    %1921 = vmatpush.msra.mxu0 0.0
    %1922 = vmatpush.msra.mxu0 0.0
    %1923 = vmatpush.msra.mxu0 0.0
    %1924 = vmatpush.msra.mxu0 %v1847
    %1925 = vmatmul.f32.gmra.mxu0 %v1835
    %v1926 = vpop.f32.mrf.mxu0
    %v1927 = vadd.f32 0.0, %v1926
    %1928 = vdwg.mxu0
    %v1929 = vadd.f32 %v1812, %v1867
    %v1930 = vadd.f32 %v1813, %v1887
    %v1931 = vadd.f32 %v1814, %v1907
    %v1932 = vadd.f32 %v1815, %v1927
    %s1933 = scalar_lea.vmem %s8, 16
    %v1934 = vld [vmem:[%s1933] sm:$0x3]
    %1935 = vrot.lane.b32.xlu0 %v1016, 111
    %v1936 = vpop.permute.xlu0 %1935
    %1937 = vrot.lane.b32.xlu0 %v1017, 111
    %v1938 = vpop.permute.xlu0 %1937
    %1939 = vrot.lane.b32.xlu0 %v1018, 111
    %v1940 = vpop.permute.xlu0 %1939
    %1941 = vrot.lane.b32.xlu0 %v1019, 111
    %v1942 = vpop.permute.xlu0 %1941
    %v1943 = vsel %vm488, %v1940, %v1942
    %v1944 = vsel %vm488, %v1938, %v1940
    %v1945 = vsel %vm488, %v1936, %v1938
    %v1946 = vsel %vm488, %v1942, %v1936
    %v1947 = vsel %vm501, %v1945, 0.0
    %v1948 = vsel %vm502, %v1944, 0.0
    %v1949 = vsel %vm503, %v1943, 0.0
    %v1950 = vsel %vm504, %v1946, 0.0
    %v1952 = vsel %vm1055, %v1934, 0
    %v1955 = vsel %vm1059, %v1947, 0
    %v1958 = vsel %vm1059, %v1948, 0
    %v1961 = vsel %vm1059, %v1949, 0
    %v1964 = vsel %vm1059, %v1950, 0
    %1966 = vmatpush.msra.mxu0 0.0
    %1967 = vmatpush.msra.mxu0 0.0
    %1968 = vmatpush.msra.mxu0 0.0
    %1969 = vmatpush.msra.mxu0 0.0
    %1970 = vmatpush.msra.mxu0 0.0
    %1971 = vmatpush.msra.mxu0 0.0
    %1972 = vmatpush.msra.mxu0 0.0
    %1973 = vmatpush.msra.mxu0 0.0
    %1974 = vmatpush.msra.mxu0 0.0
    %1975 = vmatpush.msra.mxu0 0.0
    %1976 = vmatpush.msra.mxu0 0.0
    %1977 = vmatpush.msra.mxu0 0.0
    %1978 = vmatpush.msra.mxu0 0.0
    %1979 = vmatpush.msra.mxu0 0.0
    %1980 = vmatpush.msra.mxu0 0.0
    %1981 = vmatpush.msra.mxu0 %v1955
    %1982 = vmatmul.f32.gmra.mxu0 %v1952
    %v1983 = vpop.f32.mrf.mxu0
    %v1984 = vadd.f32 0.0, %v1983
    %1985 = vdwg.mxu0
    %1986 = vmatpush.msra.mxu0 0.0
    %1987 = vmatpush.msra.mxu0 0.0
    %1988 = vmatpush.msra.mxu0 0.0
    %1989 = vmatpush.msra.mxu0 0.0
    %1990 = vmatpush.msra.mxu0 0.0
    %1991 = vmatpush.msra.mxu0 0.0
    %1992 = vmatpush.msra.mxu0 0.0
    %1993 = vmatpush.msra.mxu0 0.0
    %1994 = vmatpush.msra.mxu0 0.0
    %1995 = vmatpush.msra.mxu0 0.0
    %1996 = vmatpush.msra.mxu0 0.0
    %1997 = vmatpush.msra.mxu0 0.0
    %1998 = vmatpush.msra.mxu0 0.0
    %1999 = vmatpush.msra.mxu0 0.0
    %2000 = vmatpush.msra.mxu0 0.0
    %2001 = vmatpush.msra.mxu0 %v1958
    %2002 = vmatmul.f32.gmra.mxu0 %v1952
    %v2003 = vpop.f32.mrf.mxu0
    %v2004 = vadd.f32 0.0, %v2003
    %2005 = vdwg.mxu0
    %2006 = vmatpush.msra.mxu0 0.0
    %2007 = vmatpush.msra.mxu0 0.0
    %2008 = vmatpush.msra.mxu0 0.0
    %2009 = vmatpush.msra.mxu0 0.0
    %2010 = vmatpush.msra.mxu0 0.0
    %2011 = vmatpush.msra.mxu0 0.0
    %2012 = vmatpush.msra.mxu0 0.0
    %2013 = vmatpush.msra.mxu0 0.0
    %2014 = vmatpush.msra.mxu0 0.0
    %2015 = vmatpush.msra.mxu0 0.0
    %2016 = vmatpush.msra.mxu0 0.0
    %2017 = vmatpush.msra.mxu0 0.0
    %2018 = vmatpush.msra.mxu0 0.0
    %2019 = vmatpush.msra.mxu0 0.0
    %2020 = vmatpush.msra.mxu0 0.0
    %2021 = vmatpush.msra.mxu0 %v1961
    %2022 = vmatmul.f32.gmra.mxu0 %v1952
    %v2023 = vpop.f32.mrf.mxu0
    %v2024 = vadd.f32 0.0, %v2023
    %2025 = vdwg.mxu0
    %2026 = vmatpush.msra.mxu0 0.0
    %2027 = vmatpush.msra.mxu0 0.0
    %2028 = vmatpush.msra.mxu0 0.0
    %2029 = vmatpush.msra.mxu0 0.0
    %2030 = vmatpush.msra.mxu0 0.0
    %2031 = vmatpush.msra.mxu0 0.0
    %2032 = vmatpush.msra.mxu0 0.0
    %2033 = vmatpush.msra.mxu0 0.0
    %2034 = vmatpush.msra.mxu0 0.0
    %2035 = vmatpush.msra.mxu0 0.0
    %2036 = vmatpush.msra.mxu0 0.0
    %2037 = vmatpush.msra.mxu0 0.0
    %2038 = vmatpush.msra.mxu0 0.0
    %2039 = vmatpush.msra.mxu0 0.0
    %2040 = vmatpush.msra.mxu0 0.0
    %2041 = vmatpush.msra.mxu0 %v1964
    %2042 = vmatmul.f32.gmra.mxu0 %v1952
    %v2043 = vpop.f32.mrf.mxu0
    %v2044 = vadd.f32 0.0, %v2043
    %2045 = vdwg.mxu0
    %v2046 = vadd.f32 %v1929, %v1984
    %v2047 = vadd.f32 %v1930, %v2004
    %v2048 = vadd.f32 %v1931, %v2024
    %v2049 = vadd.f32 %v1932, %v2044
    %v2050 = vld [vmem:[%s9] sm:$0x3]
    %2052 = vset.pattern.permute.xlu0 0
    %2053 = vperm.xlu0 %2052, %v2050
    %v2054 = vpop.permute.xlu0 %2053
    %v2056 = vadd.f32 %v2046, %v2054
    %v2057 = vadd.f32 %v2047, %v2054
    %v2058 = vadd.f32 %v2048, %v2054
    %v2059 = vadd.f32 %v2049, %v2054
    %v2060 = vsub.f32 0.0, %v2056
    %v2061 = vsub.f32 0.0, %v2057
    %v2062 = vsub.f32 0.0, %v2058
    %v2063 = vsub.f32 0.0, %v2059
    %v2064 = vmul.f32 %v2060, 1.442695
    %v2065 = vpow.pop %v2064
    %v2066 = vmul.f32 %v2061, 1.442695
    %v2067 = vpow.pop %v2066
    %v2068 = vmul.f32 %v2062, 1.442695
    %v2069 = vpow.pop %v2068
    %v2070 = vmul.f32 %v2063, 1.442695
    %v2071 = vpow.pop %v2070
    %v2072 = vadd.f32 %v2065, 1.0
    %v2073 = vadd.f32 %v2067, 1.0
    %v2074 = vadd.f32 %v2069, 1.0
    %v2075 = vadd.f32 %v2071, 1.0
    %v2076 = vrcp.pop %v2072
    %v2077 = vmul.f32 %v2072, %v2076
    %v2078 = vsub.f32 1.0, %v2077
    %v2079 = vmul.f32 %v2076, %v2078
    %v2080 = vadd.f32 %v2076, %v2079
    %vm2081 = vweird.f32 %v2072
    %vm2082 = vweird.f32 %v2076
    %vm2083 = vmor %vm2081, %vm2082
    %v2084 = vsel %vm2083, %v2076, %v2080
    %v2085 = vand.u32 2147483647, %v2072
    %vm2086 = vcmp.eq.f32.partialorder %v2085, 8.507059e+37
    %v2087 = vand.u32 %v2072, 2147483648
    %v2088 = vor.u32 1.1754944e-38, %v2087
    %v2089 = vsel %vm2086, %v2088, %v2084
    %v2090 = vmul.f32 1.0, %v2089
    %v2091 = vrcp.pop %v2073
    %v2092 = vmul.f32 %v2073, %v2091
    %v2093 = vsub.f32 1.0, %v2092
    %v2094 = vmul.f32 %v2091, %v2093
    %v2095 = vadd.f32 %v2091, %v2094
    %vm2096 = vweird.f32 %v2073
    %vm2097 = vweird.f32 %v2091
    %vm2098 = vmor %vm2096, %vm2097
    %v2099 = vsel %vm2098, %v2091, %v2095
    %v2100 = vand.u32 2147483647, %v2073
    %vm2101 = vcmp.eq.f32.partialorder %v2100, 8.507059e+37
    %v2102 = vand.u32 %v2073, 2147483648
    %v2103 = vor.u32 1.1754944e-38, %v2102
    %v2104 = vsel %vm2101, %v2103, %v2099
    %v2105 = vmul.f32 1.0, %v2104
    %v2106 = vrcp.pop %v2074
    %v2107 = vmul.f32 %v2074, %v2106
    %v2108 = vsub.f32 1.0, %v2107
    %v2109 = vmul.f32 %v2106, %v2108
    %v2110 = vadd.f32 %v2106, %v2109
    %vm2111 = vweird.f32 %v2074
    %vm2112 = vweird.f32 %v2106
    %vm2113 = vmor %vm2111, %vm2112
    %v2114 = vsel %vm2113, %v2106, %v2110
    %v2115 = vand.u32 2147483647, %v2074
    %vm2116 = vcmp.eq.f32.partialorder %v2115, 8.507059e+37
    %v2117 = vand.u32 %v2074, 2147483648
    %v2118 = vor.u32 1.1754944e-38, %v2117
    %v2119 = vsel %vm2116, %v2118, %v2114
    %v2120 = vmul.f32 1.0, %v2119
    %v2121 = vrcp.pop %v2075
    %v2122 = vmul.f32 %v2075, %v2121
    %v2123 = vsub.f32 1.0, %v2122
    %v2124 = vmul.f32 %v2121, %v2123
    %v2125 = vadd.f32 %v2121, %v2124
    %vm2126 = vweird.f32 %v2075
    %vm2127 = vweird.f32 %v2121
    %vm2128 = vmor %vm2126, %vm2127
    %v2129 = vsel %vm2128, %v2121, %v2125
    %v2130 = vand.u32 2147483647, %v2075
    %vm2131 = vcmp.eq.f32.partialorder %v2130, 8.507059e+37
    %v2132 = vand.u32 %v2075, 2147483648
    %v2133 = vor.u32 1.1754944e-38, %v2132
    %v2134 = vsel %vm2131, %v2133, %v2129
    %v2135 = vmul.f32 1.0, %v2134
    %v2136 = vperm.slane %v2090, 0
    %v2137 = vperm.slane %v2105, 0
    %v2138 = vperm.slane %v2120, 0
    %v2139 = vperm.slane %v2135, 0
    %v2140 = vmul.f32 %v66, %v2136
    %v2141 = vmul.f32 %v67, %v2137
    %v2142 = vmul.f32 %v69, %v2138
    %v2143 = vmul.f32 %v70, %v2139
    %v2144 = vperm.slane %v2090, 1
    %v2145 = vperm.slane %v2105, 1
    %v2146 = vperm.slane %v2120, 1
    %v2147 = vperm.slane %v2135, 1
    %v2148 = vmul.f32 %v71, %v2144
    %v2149 = vmul.f32 %v72, %v2145
    %v2150 = vmul.f32 %v74, %v2146
    %v2151 = vmul.f32 %v75, %v2147
    %v2152 = vadd.f32 %v2140, %v2148
    %v2153 = vadd.f32 %v2141, %v2149
    %v2154 = vadd.f32 %v2142, %v2150
    %v2155 = vadd.f32 %v2143, %v2151
    %2156 = vst [vmem:[#allocation8] sm:$0xff] %v2152
    %2157 = vst [vmem:[#allocation8 + $0x8] sm:$0xff] %v2153
    %s2158 = scalar_lea.vmem [#allocation8], 16
    %2159 = vst [vmem:[%s2158] sm:$0xff] %v2154
    %2160 = vst [vmem:[%s2158 + $0x8] sm:$0xff] %v2155
    // Predicated region
    $region50: #{tpu_custom_call.1} parent=1 // pred_check
      _
    $region51: #{tpu_custom_call.1} parent=1 // pred_check_branch
      %2162 = sbr.rel (0) target = $region53
    $region52: #{tpu_custom_call.1} parent=1 // pred_region
      %2164 = vsyncadd [#allocation5], 0
      %s2165 = sshll.u32 [#allocation8], 4
      %s2166 = int_to_ptr.vmem [resolvable:$true] %s2165
      %s2167 = sshll.u32 %s10, 4
      %s2168 = int_to_ptr.hbm [resolvable:$true] %s2167
      %2173 = dma.vmem_to_hbm [thread:$0]  %s2166, 512, %s2168, [#allocation5], 256, 256, 16
    $region53: #{tpu_custom_call.1} parent=1 // pred_fallthru
      _
    // Predicated region
    $region54: #{tpu_custom_call.1} parent=1 // pred_check
      _
    $region55: #{tpu_custom_call.1} parent=1 // pred_check_branch
      %2175 = sbr.rel (0) target = $region57
    $region56: #{tpu_custom_call.1} parent=1 // pred_region
      %2177 = dma.done [#allocation5], 512
    $region57: #{tpu_custom_call.1} parent=1 // pred_fallthru
      _
    %2178 = vsyncpa [#allocation4], 1
    %2179 = vsyncpa [#allocation7], 1
    %2180 = vsyncpa [#allocation5], 1

</llo_original>
